<compile_context>
chip_gen: v6e
topology: v6e:2x2x1
jax: 0.10.0
libtpu: 0.0.40
codegen_flags: <defaults>
</compile_context>

<pallas_src>
import jax
import jax.numpy as jnp
from jax.experimental import pallas as pl
from jax.experimental.pallas import tpu as pltpu

MATMUL_DTYPE = jnp.float32   # set to jnp.bfloat16 on v6e/v7x for MXU throughput
_EPS = 1e-5                  # PyTorch BatchNorm1d default eps


# ---------------------------------------------------------------------------
# Fused kernel: whole VideoCnnPool forward in one program, everything in VMEM.
# ---------------------------------------------------------------------------
def _fused_video_cnn_pool_kernel(
        x_ref, mp_ref, mn_ref, pool_ref,
        w0_ref, b0_ref, w1_ref, b1_ref, w2_ref, b2_ref, w3_ref, b3_ref,
        lw_ref, lb_ref, o_ref):
    # x_ref:   (B*T, Cin0)  channel-last activations, batch folded into M
    # mp/mn:   (B*T, 1)     masks: 0 at first / last row of each batch item
    # pool:    (B, B*T)     temporal-mean pooling matrix (1/T within own batch)
    # wN:      (3, Cin, Cout)  conv taps with BN scale folded in
    # bN:      (1, Cout)       folded conv-bias + BN shift
    # lw/lb:   (C, nc) / (1, nc) classifier
    # o_ref:   (B, nc)
    BT = x_ref.shape[0]
    mp = mp_ref[...]
    mn = mn_ref[...]

    def conv_bn_relu(h, w_ref, b_ref):
        # Conv1d(k=3, padding='same') + folded BN + ReLU.
        # Three un-shifted (BT,Cin)@(Cin,Cout) MXU matmuls; the t-1 / t+1 taps
        # are obtained by rolling the *products* along sublanes (XLU) and
        # masking batch-boundary rows -- no padding, no misaligned slices.
        hd = h.astype(w_ref.dtype)
        p0 = jnp.dot(hd, w_ref[0], preferred_element_type=jnp.float32)  # pairs x[t-1]
        p1 = jnp.dot(hd, w_ref[1], preferred_element_type=jnp.float32)  # pairs x[t]
        p2 = jnp.dot(hd, w_ref[2], preferred_element_type=jnp.float32)  # pairs x[t+1]
        acc = p1 + pltpu.roll(p0, 1, 0) * mp + pltpu.roll(p2, BT - 1, 0) * mn
        return jnp.maximum(acc + b_ref[...], 0.0)   # BN scale already in weights

    h = x_ref[...].astype(jnp.float32)
    h = conv_bn_relu(h, w0_ref, b0_ref)
    h = conv_bn_relu(h, w1_ref, b1_ref)
    h = conv_bn_relu(h, w2_ref, b2_ref)
    h = conv_bn_relu(h, w3_ref, b3_ref)

    # Temporal mean per batch item via pooling matmul, fused with the classifier.
    hm = jnp.dot(pool_ref[...], h, preferred_element_type=jnp.float32)      # (B, C)
    o_ref[...] = (jnp.dot(hm, lw_ref[...].astype(jnp.float32),
                          preferred_element_type=jnp.float32) + lb_ref[...])


def video_cnn_pool_forward(x_ncl, kp):
    """Pallas forward. x_ncl: (B, C_in, T) float32, like the PyTorch module."""
    B, C_in, T = x_ncl.shape
    # Single layout change: NCL -> channel-last, batch folded into the M axis.
    x = jnp.transpose(x_ncl, (0, 2, 1)).reshape(B * T, C_in)
    num_classes = kp["lw"].shape[1]
    return pl.pallas_call(
        _fused_video_cnn_pool_kernel,
        out_shape=jax.ShapeDtypeStruct((B, num_classes), jnp.float32),
        # No grid: single program, full arrays resident in VMEM (~1.2 MB total).
    )(x, kp["mask_prev"], kp["mask_next"], kp["pool"],
      kp["w"][0], kp["b"][0], kp["w"][1], kp["b"][1],
      kp["w"][2], kp["b"][2], kp["w"][3], kp["b"][3],
      kp["lw"], kp["lb"])


# ---------------------------------------------------------------------------
# Parameters (deterministic, synthetic) and one-time kernel-param folding.
# ---------------------------------------------------------------------------
def init_params(key, num_classes=8, input_dim=768, h_dim=128, out_dim=128):
    conv_dims = [(input_dim, 64), (64, h_dim), (h_dim, 128), (128, out_dim)]
    convs = []
    for cin, cout in conv_dims:
        key, k1, k2, k3, k4, k5, k6 = jax.random.split(key, 7)
        w = jax.random.normal(k1, (3, cin, cout), jnp.float32) / jnp.sqrt(3.0 * cin)
        cb = jax.random.normal(k2, (cout,), jnp.float32) * 0.02
        gamma = jax.random.uniform(k3, (cout,), jnp.float32, minval=0.5, maxval=1.5)
        beta = jax.random.normal(k4, (cout,), jnp.float32) * 0.1
        rmean = jax.random.normal(k5, (cout,), jnp.float32) * 0.1
        rvar = jax.random.uniform(k6, (cout,), jnp.float32, minval=0.5, maxval=1.5)
        convs.append(dict(w=w, cb=cb, gamma=gamma, beta=beta, rmean=rmean, rvar=rvar))
    key, k1, k2 = jax.random.split(key, 3)
    lw = jax.random.normal(k1, (out_dim, num_classes), jnp.float32) / jnp.sqrt(out_dim)
    lb = jax.random.normal(k2, (num_classes,), jnp.float32) * 0.02
    return dict(convs=convs, lw=lw, lb=lb)


def prepare_kernel_params(params, B, T, matmul_dtype=MATMUL_DTYPE):
    """One-time transform: fold BN into conv weights/bias, build masks & pooling."""
    ws, bs = [], []
    for p in params["convs"]:
        scale = p["gamma"] / jnp.sqrt(p["rvar"] + _EPS)
        ws.append((p["w"] * scale[None, None, :]).astype(matmul_dtype))
        bs.append((p["beta"] + (p["cb"] - p["rmean"]) * scale)
                  .reshape(1, -1).astype(jnp.float32))
    rows = jnp.arange(B * T, dtype=jnp.int32)
    mask_prev = (rows % T != 0).astype(jnp.float32).reshape(B * T, 1)
    mask_next = (rows % T != T - 1).astype(jnp.float32).reshape(B * T, 1)
    pool = ((rows[None, :] // T) == jnp.arange(B, dtype=jnp.int32)[:, None])
    pool = pool.astype(jnp.float32) / T
    nc = params["lw"].shape[1]
    return dict(w=ws, b=bs,
                lw=params["lw"].astype(jnp.float32),
                lb=params["lb"].reshape(1, nc).astype(jnp.float32),
                mask_prev=mask_prev, mask_next=mask_next, pool=pool)


# ---------------------------------------------------------------------------
# Plain-JAX reference (eval-mode BN), same parameters.
# ---------------------------------------------------------------------------
def reference_forward(x_ncl, params):
    x = x_ncl
    for p in params["convs"]:
        w_oik = jnp.transpose(p["w"], (2, 1, 0))  # (Cout, Cin, 3)
        x = jax.lax.conv_general_dilated(
            x, w_oik, window_strides=(1,), padding="SAME",
            dimension_numbers=("NCH", "OIH", "NCH"))
        x = x + p["cb"][None, :, None]
        x = (x - p["rmean"][None, :, None]) / jnp.sqrt(p["rvar"] + _EPS)[None, :, None]
        x = x * p["gamma"][None, :, None] + p["beta"][None, :, None]
        x = jnp.maximum(x, 0.0)
    xm = jnp.mean(x, axis=-1)  # (B, out_dim)
    return xm @ params["lw"] + params["lb"]


# ---------------------------------------------------------------------------
if __name__ == "__main__":
    B, C_IN, T = 2, 768, 16           # small shapes; module-default channel dims
    NUM_CLASSES, H_DIM, OUT_DIM = 8, 128, 128

    key = jax.random.PRNGKey(0)
    key, kx, kp = jax.random.split(key, 3)
    x = jax.random.normal(kx, (B, C_IN, T), jnp.float32)   # PyTorch NCL input
    params = init_params(kp, num_classes=NUM_CLASSES, input_dim=C_IN,
                         h_dim=H_DIM, out_dim=OUT_DIM)
    kparams = prepare_kernel_params(params, B, T)

    fwd = jax.jit(video_cnn_pool_forward)
    out = jax.block_until_ready(fwd(x, kparams))
    assert out.shape == (B, NUM_CLASSES), out.shape

    ref = jax.block_until_ready(reference_forward(x, params))
    tol = 1e-4 if MATMUL_DTYPE == jnp.float32 else 3e-2
    assert jnp.allclose(out, ref, rtol=tol, atol=tol), (
        f"max abs err {jnp.max(jnp.abs(out - ref))}")

    print("KERNEL_OK")
</pallas_src>

<mosaic_0001>
module attributes {stable_mosaic.version = 11 : i64} {
  func.func @_fused_video_cnn_pool_kernel(%arg0: memref<32x768xf32, #tpu.memory_space<vmem>>, %arg1: memref<32x1xf32, #tpu.memory_space<vmem>>, %arg2: memref<32x1xf32, #tpu.memory_space<vmem>>, %arg3: memref<2x32xf32, #tpu.memory_space<vmem>>, %arg4: memref<3x768x64xf32, #tpu.memory_space<vmem>>, %arg5: memref<1x64xf32, #tpu.memory_space<vmem>>, %arg6: memref<3x64x128xf32, #tpu.memory_space<vmem>>, %arg7: memref<1x128xf32, #tpu.memory_space<vmem>>, %arg8: memref<3x128x128xf32, #tpu.memory_space<vmem>>, %arg9: memref<1x128xf32, #tpu.memory_space<vmem>>, %arg10: memref<3x128x128xf32, #tpu.memory_space<vmem>>, %arg11: memref<1x128xf32, #tpu.memory_space<vmem>>, %arg12: memref<128x8xf32, #tpu.memory_space<vmem>>, %arg13: memref<1x8xf32, #tpu.memory_space<vmem>>, %arg14: memref<2x8xf32, #tpu.memory_space<vmem>>) attributes {dimension_semantics = [], scalar_prefetch = 0 : i64, scratch_operands = 0 : i64, tpu.core_type = #tpu.core_type<tc>} {
    %c0 = arith.constant 0 : index
    %c0_0 = arith.constant 0 : index
    %0 = vector.load %arg1[%c0, %c0_0] : memref<32x1xf32, #tpu.memory_space<vmem>>, vector<32x1xf32>
    %c0_1 = arith.constant 0 : index
    %c0_2 = arith.constant 0 : index
    %1 = vector.load %arg2[%c0_1, %c0_2] : memref<32x1xf32, #tpu.memory_space<vmem>>, vector<32x1xf32>
    %c0_3 = arith.constant 0 : index
    %c0_4 = arith.constant 0 : index
    %2 = vector.load %arg0[%c0_3, %c0_4] : memref<32x768xf32, #tpu.memory_space<vmem>>, vector<32x768xf32>
    %c0_5 = arith.constant 0 : index
    %c0_6 = arith.constant 0 : index
    %c0_7 = arith.constant 0 : index
    %3 = vector.load %arg4[%c0_5, %c0_6, %c0_7] : memref<3x768x64xf32, #tpu.memory_space<vmem>>, vector<1x768x64xf32>
    %4 = vector.shape_cast %3 : vector<1x768x64xf32> to vector<768x64xf32>
    %cst = arith.constant dense<0.000000e+00> : vector<32x64xf32>
    %5 = tpu.matmul %2, %4, %cst {dimension_numbers = #tpu.dot_dimension_numbers<[1], [0], [0], [1], [0, 0, 1, 1], [], []>} : vector<32x768xf32>, vector<768x64xf32>, vector<32x64xf32> -> vector<32x64xf32>
    %c1 = arith.constant 1 : index
    %c0_8 = arith.constant 0 : index
    %c0_9 = arith.constant 0 : index
    %6 = vector.load %arg4[%c1, %c0_8, %c0_9] : memref<3x768x64xf32, #tpu.memory_space<vmem>>, vector<1x768x64xf32>
    %7 = vector.shape_cast %6 : vector<1x768x64xf32> to vector<768x64xf32>
    %cst_10 = arith.constant dense<0.000000e+00> : vector<32x64xf32>
    %8 = tpu.matmul %2, %7, %cst_10 {dimension_numbers = #tpu.dot_dimension_numbers<[1], [0], [0], [1], [0, 0, 1, 1], [], []>} : vector<32x768xf32>, vector<768x64xf32>, vector<32x64xf32> -> vector<32x64xf32>
    %c2 = arith.constant 2 : index
    %c0_11 = arith.constant 0 : index
    %c0_12 = arith.constant 0 : index
    %9 = vector.load %arg4[%c2, %c0_11, %c0_12] : memref<3x768x64xf32, #tpu.memory_space<vmem>>, vector<1x768x64xf32>
    %10 = vector.shape_cast %9 : vector<1x768x64xf32> to vector<768x64xf32>
    %cst_13 = arith.constant dense<0.000000e+00> : vector<32x64xf32>
    %11 = tpu.matmul %2, %10, %cst_13 {dimension_numbers = #tpu.dot_dimension_numbers<[1], [0], [0], [1], [0, 0, 1, 1], [], []>} : vector<32x768xf32>, vector<768x64xf32>, vector<32x64xf32> -> vector<32x64xf32>
    %c1_i32 = arith.constant 1 : i32
    %12 = tpu.dynamic_rotate %5 by %c1_i32 dim 0 : vector<32x64xf32>, i32 -> vector<32x64xf32>
    %13 = vector.broadcast %0 : vector<32x1xf32> to vector<32x64xf32>
    %14 = arith.mulf %12, %13 : vector<32x64xf32>
    %15 = arith.addf %8, %14 : vector<32x64xf32>
    %c31_i32 = arith.constant 31 : i32
    %16 = tpu.dynamic_rotate %11 by %c31_i32 dim 0 : vector<32x64xf32>, i32 -> vector<32x64xf32>
    %17 = vector.broadcast %1 : vector<32x1xf32> to vector<32x64xf32>
    %18 = arith.mulf %16, %17 : vector<32x64xf32>
    %19 = arith.addf %15, %18 : vector<32x64xf32>
    %c0_14 = arith.constant 0 : index
    %c0_15 = arith.constant 0 : index
    %20 = vector.load %arg5[%c0_14, %c0_15] : memref<1x64xf32, #tpu.memory_space<vmem>>, vector<1x64xf32>
    %21 = vector.broadcast %20 : vector<1x64xf32> to vector<32x64xf32>
    %22 = arith.addf %19, %21 : vector<32x64xf32>
    %cst_16 = arith.constant 0.000000e+00 : f32
    %23 = vector.broadcast %cst_16 : f32 to vector<32x64xf32>
    %24 = arith.maximumf %22, %23 : vector<32x64xf32>
    %c0_17 = arith.constant 0 : index
    %c0_18 = arith.constant 0 : index
    %c0_19 = arith.constant 0 : index
    %25 = vector.load %arg6[%c0_17, %c0_18, %c0_19] : memref<3x64x128xf32, #tpu.memory_space<vmem>>, vector<1x64x128xf32>
    %26 = vector.shape_cast %25 : vector<1x64x128xf32> to vector<64x128xf32>
    %cst_20 = arith.constant dense<0.000000e+00> : vector<32x128xf32>
    %27 = tpu.matmul %24, %26, %cst_20 {dimension_numbers = #tpu.dot_dimension_numbers<[1], [0], [0], [1], [0, 0, 1, 1], [], []>} : vector<32x64xf32>, vector<64x128xf32>, vector<32x128xf32> -> vector<32x128xf32>
    %c1_21 = arith.constant 1 : index
    %c0_22 = arith.constant 0 : index
    %c0_23 = arith.constant 0 : index
    %28 = vector.load %arg6[%c1_21, %c0_22, %c0_23] : memref<3x64x128xf32, #tpu.memory_space<vmem>>, vector<1x64x128xf32>
    %29 = vector.shape_cast %28 : vector<1x64x128xf32> to vector<64x128xf32>
    %cst_24 = arith.constant dense<0.000000e+00> : vector<32x128xf32>
    %30 = tpu.matmul %24, %29, %cst_24 {dimension_numbers = #tpu.dot_dimension_numbers<[1], [0], [0], [1], [0, 0, 1, 1], [], []>} : vector<32x64xf32>, vector<64x128xf32>, vector<32x128xf32> -> vector<32x128xf32>
    %c2_25 = arith.constant 2 : index
    %c0_26 = arith.constant 0 : index
    %c0_27 = arith.constant 0 : index
    %31 = vector.load %arg6[%c2_25, %c0_26, %c0_27] : memref<3x64x128xf32, #tpu.memory_space<vmem>>, vector<1x64x128xf32>
    %32 = vector.shape_cast %31 : vector<1x64x128xf32> to vector<64x128xf32>
    %cst_28 = arith.constant dense<0.000000e+00> : vector<32x128xf32>
    %33 = tpu.matmul %24, %32, %cst_28 {dimension_numbers = #tpu.dot_dimension_numbers<[1], [0], [0], [1], [0, 0, 1, 1], [], []>} : vector<32x64xf32>, vector<64x128xf32>, vector<32x128xf32> -> vector<32x128xf32>
    %c1_i32_29 = arith.constant 1 : i32
    %34 = tpu.dynamic_rotate %27 by %c1_i32_29 dim 0 : vector<32x128xf32>, i32 -> vector<32x128xf32>
    %35 = vector.broadcast %0 : vector<32x1xf32> to vector<32x128xf32>
    %36 = arith.mulf %34, %35 : vector<32x128xf32>
    %37 = arith.addf %30, %36 : vector<32x128xf32>
    %c31_i32_30 = arith.constant 31 : i32
    %38 = tpu.dynamic_rotate %33 by %c31_i32_30 dim 0 : vector<32x128xf32>, i32 -> vector<32x128xf32>
    %39 = vector.broadcast %1 : vector<32x1xf32> to vector<32x128xf32>
    %40 = arith.mulf %38, %39 : vector<32x128xf32>
    %41 = arith.addf %37, %40 : vector<32x128xf32>
    %c0_31 = arith.constant 0 : index
    %c0_32 = arith.constant 0 : index
    %42 = vector.load %arg7[%c0_31, %c0_32] : memref<1x128xf32, #tpu.memory_space<vmem>>, vector<1x128xf32>
    %43 = vector.broadcast %42 : vector<1x128xf32> to vector<32x128xf32>
    %44 = arith.addf %41, %43 : vector<32x128xf32>
    %cst_33 = arith.constant 0.000000e+00 : f32
    %45 = vector.broadcast %cst_33 : f32 to vector<32x128xf32>
    %46 = arith.maximumf %44, %45 : vector<32x128xf32>
    %c0_34 = arith.constant 0 : index
    %c0_35 = arith.constant 0 : index
    %c0_36 = arith.constant 0 : index
    %47 = vector.load %arg8[%c0_34, %c0_35, %c0_36] : memref<3x128x128xf32, #tpu.memory_space<vmem>>, vector<1x128x128xf32>
    %48 = vector.shape_cast %47 : vector<1x128x128xf32> to vector<128x128xf32>
    %cst_37 = arith.constant dense<0.000000e+00> : vector<32x128xf32>
    %49 = tpu.matmul %46, %48, %cst_37 {dimension_numbers = #tpu.dot_dimension_numbers<[1], [0], [0], [1], [0, 0, 1, 1], [], []>} : vector<32x128xf32>, vector<128x128xf32>, vector<32x128xf32> -> vector<32x128xf32>
    %c1_38 = arith.constant 1 : index
    %c0_39 = arith.constant 0 : index
    %c0_40 = arith.constant 0 : index
    %50 = vector.load %arg8[%c1_38, %c0_39, %c0_40] : memref<3x128x128xf32, #tpu.memory_space<vmem>>, vector<1x128x128xf32>
    %51 = vector.shape_cast %50 : vector<1x128x128xf32> to vector<128x128xf32>
    %cst_41 = arith.constant dense<0.000000e+00> : vector<32x128xf32>
    %52 = tpu.matmul %46, %51, %cst_41 {dimension_numbers = #tpu.dot_dimension_numbers<[1], [0], [0], [1], [0, 0, 1, 1], [], []>} : vector<32x128xf32>, vector<128x128xf32>, vector<32x128xf32> -> vector<32x128xf32>
    %c2_42 = arith.constant 2 : index
    %c0_43 = arith.constant 0 : index
    %c0_44 = arith.constant 0 : index
    %53 = vector.load %arg8[%c2_42, %c0_43, %c0_44] : memref<3x128x128xf32, #tpu.memory_space<vmem>>, vector<1x128x128xf32>
    %54 = vector.shape_cast %53 : vector<1x128x128xf32> to vector<128x128xf32>
    %cst_45 = arith.constant dense<0.000000e+00> : vector<32x128xf32>
    %55 = tpu.matmul %46, %54, %cst_45 {dimension_numbers = #tpu.dot_dimension_numbers<[1], [0], [0], [1], [0, 0, 1, 1], [], []>} : vector<32x128xf32>, vector<128x128xf32>, vector<32x128xf32> -> vector<32x128xf32>
    %c1_i32_46 = arith.constant 1 : i32
    %56 = tpu.dynamic_rotate %49 by %c1_i32_46 dim 0 : vector<32x128xf32>, i32 -> vector<32x128xf32>
    %57 = vector.broadcast %0 : vector<32x1xf32> to vector<32x128xf32>
    %58 = arith.mulf %56, %57 : vector<32x128xf32>
    %59 = arith.addf %52, %58 : vector<32x128xf32>
    %c31_i32_47 = arith.constant 31 : i32
    %60 = tpu.dynamic_rotate %55 by %c31_i32_47 dim 0 : vector<32x128xf32>, i32 -> vector<32x128xf32>
    %61 = vector.broadcast %1 : vector<32x1xf32> to vector<32x128xf32>
    %62 = arith.mulf %60, %61 : vector<32x128xf32>
    %63 = arith.addf %59, %62 : vector<32x128xf32>
    %c0_48 = arith.constant 0 : index
    %c0_49 = arith.constant 0 : index
    %64 = vector.load %arg9[%c0_48, %c0_49] : memref<1x128xf32, #tpu.memory_space<vmem>>, vector<1x128xf32>
    %65 = vector.broadcast %64 : vector<1x128xf32> to vector<32x128xf32>
    %66 = arith.addf %63, %65 : vector<32x128xf32>
    %cst_50 = arith.constant 0.000000e+00 : f32
    %67 = vector.broadcast %cst_50 : f32 to vector<32x128xf32>
    %68 = arith.maximumf %66, %67 : vector<32x128xf32>
    %c0_51 = arith.constant 0 : index
    %c0_52 = arith.constant 0 : index
    %c0_53 = arith.constant 0 : index
    %69 = vector.load %arg10[%c0_51, %c0_52, %c0_53] : memref<3x128x128xf32, #tpu.memory_space<vmem>>, vector<1x128x128xf32>
    %70 = vector.shape_cast %69 : vector<1x128x128xf32> to vector<128x128xf32>
    %cst_54 = arith.constant dense<0.000000e+00> : vector<32x128xf32>
    %71 = tpu.matmul %68, %70, %cst_54 {dimension_numbers = #tpu.dot_dimension_numbers<[1], [0], [0], [1], [0, 0, 1, 1], [], []>} : vector<32x128xf32>, vector<128x128xf32>, vector<32x128xf32> -> vector<32x128xf32>
    %c1_55 = arith.constant 1 : index
    %c0_56 = arith.constant 0 : index
    %c0_57 = arith.constant 0 : index
    %72 = vector.load %arg10[%c1_55, %c0_56, %c0_57] : memref<3x128x128xf32, #tpu.memory_space<vmem>>, vector<1x128x128xf32>
    %73 = vector.shape_cast %72 : vector<1x128x128xf32> to vector<128x128xf32>
    %cst_58 = arith.constant dense<0.000000e+00> : vector<32x128xf32>
    %74 = tpu.matmul %68, %73, %cst_58 {dimension_numbers = #tpu.dot_dimension_numbers<[1], [0], [0], [1], [0, 0, 1, 1], [], []>} : vector<32x128xf32>, vector<128x128xf32>, vector<32x128xf32> -> vector<32x128xf32>
    %c2_59 = arith.constant 2 : index
    %c0_60 = arith.constant 0 : index
    %c0_61 = arith.constant 0 : index
    %75 = vector.load %arg10[%c2_59, %c0_60, %c0_61] : memref<3x128x128xf32, #tpu.memory_space<vmem>>, vector<1x128x128xf32>
    %76 = vector.shape_cast %75 : vector<1x128x128xf32> to vector<128x128xf32>
    %cst_62 = arith.constant dense<0.000000e+00> : vector<32x128xf32>
    %77 = tpu.matmul %68, %76, %cst_62 {dimension_numbers = #tpu.dot_dimension_numbers<[1], [0], [0], [1], [0, 0, 1, 1], [], []>} : vector<32x128xf32>, vector<128x128xf32>, vector<32x128xf32> -> vector<32x128xf32>
    %c1_i32_63 = arith.constant 1 : i32
    %78 = tpu.dynamic_rotate %71 by %c1_i32_63 dim 0 : vector<32x128xf32>, i32 -> vector<32x128xf32>
    %79 = vector.broadcast %0 : vector<32x1xf32> to vector<32x128xf32>
    %80 = arith.mulf %78, %79 : vector<32x128xf32>
    %81 = arith.addf %74, %80 : vector<32x128xf32>
    %c31_i32_64 = arith.constant 31 : i32
    %82 = tpu.dynamic_rotate %77 by %c31_i32_64 dim 0 : vector<32x128xf32>, i32 -> vector<32x128xf32>
    %83 = vector.broadcast %1 : vector<32x1xf32> to vector<32x128xf32>
    %84 = arith.mulf %82, %83 : vector<32x128xf32>
    %85 = arith.addf %81, %84 : vector<32x128xf32>
    %c0_65 = arith.constant 0 : index
    %c0_66 = arith.constant 0 : index
    %86 = vector.load %arg11[%c0_65, %c0_66] : memref<1x128xf32, #tpu.memory_space<vmem>>, vector<1x128xf32>
    %87 = vector.broadcast %86 : vector<1x128xf32> to vector<32x128xf32>
    %88 = arith.addf %85, %87 : vector<32x128xf32>
    %cst_67 = arith.constant 0.000000e+00 : f32
    %89 = vector.broadcast %cst_67 : f32 to vector<32x128xf32>
    %90 = arith.maximumf %88, %89 : vector<32x128xf32>
    %c0_68 = arith.constant 0 : index
    %c0_69 = arith.constant 0 : index
    %91 = vector.load %arg3[%c0_68, %c0_69] : memref<2x32xf32, #tpu.memory_space<vmem>>, vector<2x32xf32>
    %cst_70 = arith.constant dense<0.000000e+00> : vector<2x128xf32>
    %92 = tpu.matmul %91, %90, %cst_70 {dimension_numbers = #tpu.dot_dimension_numbers<[1], [0], [0], [1], [0, 0, 1, 1], [], []>} : vector<2x32xf32>, vector<32x128xf32>, vector<2x128xf32> -> vector<2x128xf32>
    %c0_71 = arith.constant 0 : index
    %c0_72 = arith.constant 0 : index
    %93 = vector.load %arg12[%c0_71, %c0_72] : memref<128x8xf32, #tpu.memory_space<vmem>>, vector<128x8xf32>
    %cst_73 = arith.constant dense<0.000000e+00> : vector<2x8xf32>
    %94 = tpu.matmul %92, %93, %cst_73 {dimension_numbers = #tpu.dot_dimension_numbers<[1], [0], [0], [1], [0, 0, 1, 1], [], []>} : vector<2x128xf32>, vector<128x8xf32>, vector<2x8xf32> -> vector<2x8xf32>
    %c0_74 = arith.constant 0 : index
    %c0_75 = arith.constant 0 : index
    %95 = vector.load %arg13[%c0_74, %c0_75] : memref<1x8xf32, #tpu.memory_space<vmem>>, vector<1x8xf32>
    %96 = vector.broadcast %95 : vector<1x8xf32> to vector<2x8xf32>
    %97 = arith.addf %94, %96 : vector<2x8xf32>
    %c0_76 = arith.constant 0 : index
    %c0_77 = arith.constant 0 : index
    %98 = vector.load %arg14[%c0_76, %c0_77] : memref<2x8xf32, #tpu.memory_space<vmem>>, vector<2x8xf32>
    tpu.vector_store %arg14[%c0_76, %c0_77], %97 {strides = array<i32>} : memref<2x8xf32, #tpu.memory_space<vmem>>, vector<2x8xf32>,
    return
  }
}

</mosaic_0001>

<llo_original>
// kernel: video_cnn_pool_forward.1
$region0: #{video_cnn_pool_forward.1}
  #allocation0 [shape = 'u32[]', space=smem, size = 0x4, offset = 0x4, fixed_abs, tag = 'smem constant byte address 0x4 - core index']
  #allocation1 [shape = 'u32[144,128]{1,0:T(1,128)}', space=vmem, size = 0x12000, scoped, tag = 'internal scratch']
  %s0 = inlined_call_operand.vmem [shape: f32[32,768], index: 0, kind: input, shape index: {}]
  %s1 = inlined_call_operand.vmem [shape: f32[32,1], index: 1, kind: input, shape index: {}]
  %s2 = inlined_call_operand.vmem [shape: f32[32,1], index: 2, kind: input, shape index: {}]
  %s3 = inlined_call_operand.vmem [shape: f32[2,32], index: 3, kind: input, shape index: {}]
  %s4 = inlined_call_operand.vmem [shape: f32[3,768,64], index: 4, kind: input, shape index: {}]
  %s5 = inlined_call_operand.vmem [shape: f32[1,64], index: 5, kind: input, shape index: {}]
  %s6 = inlined_call_operand.vmem [shape: f32[3,64,128], index: 6, kind: input, shape index: {}]
  %s7 = inlined_call_operand.vmem [shape: f32[1,128], index: 7, kind: input, shape index: {}]
  %s8 = inlined_call_operand.vmem [shape: f32[3,128,128], index: 8, kind: input, shape index: {}]
  %s9 = inlined_call_operand.vmem [shape: f32[1,128], index: 9, kind: input, shape index: {}]
  %s10 = inlined_call_operand.vmem [shape: f32[3,128,128], index: 10, kind: input, shape index: {}]
  %s11 = inlined_call_operand.vmem [shape: f32[1,128], index: 11, kind: input, shape index: {}]
  %s12 = inlined_call_operand.vmem [shape: f32[128,8], index: 12, kind: input, shape index: {}]
  %s13 = inlined_call_operand.vmem [shape: f32[1,8], index: 13, kind: input, shape index: {}]
  %s14 = inlined_call_operand.hbm [shape: f32[2,8], index: 14, kind: output, shape index: {}]
  %s15 = sld [smem:[#allocation0]]
  $region66: #{video_cnn_pool_forward.1} parent=0
    _
  %s17 = ssub.s32 1, %s15
  %s18 = scalar_select 0, %s17, %s15
  $region1: #{video_cnn_pool_forward.1} parent=0
    #allocation2 [shape = 'u8[1024]{0}', space=vmem, size = 0x400, scoped, tag = 'output window, operand 0, single buffered']
    #allocation3 [shape = 's32[1]{0}', space=sflag, size = 0x4, scoped, tag = 'scoped memory for video_cnn_pool_forward.1']
    %19 = vsyncpa [#allocation3], 0
    // Predicated region
    $region2: #{video_cnn_pool_forward.1} parent=1 // pred_check
      _
    $region3: #{video_cnn_pool_forward.1} parent=1 // pred_check_branch
      %21 = sbr.rel (0) target = $region5
    $region4: #{video_cnn_pool_forward.1} parent=1 // pred_region
      _
    $region5: #{video_cnn_pool_forward.1} parent=1 // pred_fallthru
      _
    // Predicated region
    $region6: #{video_cnn_pool_forward.1} parent=1 // pred_check
      _
    $region7: #{video_cnn_pool_forward.1} parent=1 // pred_check_branch
      %23 = sbr.rel (0) target = $region9
    $region8: #{video_cnn_pool_forward.1} parent=1 // pred_region
      _
    $region9: #{video_cnn_pool_forward.1} parent=1 // pred_fallthru
      _
    // Predicated region
    $region10: #{video_cnn_pool_forward.1} parent=1 // pred_check
      _
    $region11: #{video_cnn_pool_forward.1} parent=1 // pred_check_branch
      %25 = sbr.rel (0) target = $region13
    $region12: #{video_cnn_pool_forward.1} parent=1 // pred_region
      _
    $region13: #{video_cnn_pool_forward.1} parent=1 // pred_fallthru
      _
    // Predicated region
    $region14: #{video_cnn_pool_forward.1} parent=1 // pred_check
      _
    $region15: #{video_cnn_pool_forward.1} parent=1 // pred_check_branch
      %27 = sbr.rel (0) target = $region17
    $region16: #{video_cnn_pool_forward.1} parent=1 // pred_region
      _
    $region17: #{video_cnn_pool_forward.1} parent=1 // pred_fallthru
      _
    // Predicated region
    $region18: #{video_cnn_pool_forward.1} parent=1 // pred_check
      _
    $region19: #{video_cnn_pool_forward.1} parent=1 // pred_check_branch
      %29 = sbr.rel (0) target = $region21
    $region20: #{video_cnn_pool_forward.1} parent=1 // pred_region
      _
    $region21: #{video_cnn_pool_forward.1} parent=1 // pred_fallthru
      _
    // Predicated region
    $region22: #{video_cnn_pool_forward.1} parent=1 // pred_check
      _
    $region23: #{video_cnn_pool_forward.1} parent=1 // pred_check_branch
      %31 = sbr.rel (0) target = $region25
    $region24: #{video_cnn_pool_forward.1} parent=1 // pred_region
      _
    $region25: #{video_cnn_pool_forward.1} parent=1 // pred_fallthru
      _
    // Predicated region
    $region26: #{video_cnn_pool_forward.1} parent=1 // pred_check
      _
    $region27: #{video_cnn_pool_forward.1} parent=1 // pred_check_branch
      %33 = sbr.rel (0) target = $region29
    $region28: #{video_cnn_pool_forward.1} parent=1 // pred_region
      _
    $region29: #{video_cnn_pool_forward.1} parent=1 // pred_fallthru
      _
    // Predicated region
    $region30: #{video_cnn_pool_forward.1} parent=1 // pred_check
      _
    $region31: #{video_cnn_pool_forward.1} parent=1 // pred_check_branch
      %35 = sbr.rel (0) target = $region33
    $region32: #{video_cnn_pool_forward.1} parent=1 // pred_region
      _
    $region33: #{video_cnn_pool_forward.1} parent=1 // pred_fallthru
      _
    // Predicated region
    $region34: #{video_cnn_pool_forward.1} parent=1 // pred_check
      _
    $region35: #{video_cnn_pool_forward.1} parent=1 // pred_check_branch
      %37 = sbr.rel (0) target = $region37
    $region36: #{video_cnn_pool_forward.1} parent=1 // pred_region
      _
    $region37: #{video_cnn_pool_forward.1} parent=1 // pred_fallthru
      _
    // Predicated region
    $region38: #{video_cnn_pool_forward.1} parent=1 // pred_check
      _
    $region39: #{video_cnn_pool_forward.1} parent=1 // pred_check_branch
      %39 = sbr.rel (0) target = $region41
    $region40: #{video_cnn_pool_forward.1} parent=1 // pred_region
      _
    $region41: #{video_cnn_pool_forward.1} parent=1 // pred_fallthru
      _
    // Predicated region
    $region42: #{video_cnn_pool_forward.1} parent=1 // pred_check
      _
    $region43: #{video_cnn_pool_forward.1} parent=1 // pred_check_branch
      %41 = sbr.rel (0) target = $region45
    $region44: #{video_cnn_pool_forward.1} parent=1 // pred_region
      _
    $region45: #{video_cnn_pool_forward.1} parent=1 // pred_fallthru
      _
    // Predicated region
    $region46: #{video_cnn_pool_forward.1} parent=1 // pred_check
      _
    $region47: #{video_cnn_pool_forward.1} parent=1 // pred_check_branch
      %43 = sbr.rel (0) target = $region49
    $region48: #{video_cnn_pool_forward.1} parent=1 // pred_region
      _
    $region49: #{video_cnn_pool_forward.1} parent=1 // pred_fallthru
      _
    // Predicated region
    $region50: #{video_cnn_pool_forward.1} parent=1 // pred_check
      _
    $region51: #{video_cnn_pool_forward.1} parent=1 // pred_check_branch
      %45 = sbr.rel (0) target = $region53
    $region52: #{video_cnn_pool_forward.1} parent=1 // pred_region
      _
    $region53: #{video_cnn_pool_forward.1} parent=1 // pred_fallthru
      _
    // Predicated region
    $region54: #{video_cnn_pool_forward.1} parent=1 // pred_check
      _
    $region55: #{video_cnn_pool_forward.1} parent=1 // pred_check_branch
      %47 = sbr.rel (0) target = $region57
    $region56: #{video_cnn_pool_forward.1} parent=1 // pred_region
      _
    $region57: #{video_cnn_pool_forward.1} parent=1 // pred_fallthru
      _
    %v48 = vld [vmem:[%s1] sm:$0xff]
    %v49 = vld [vmem:[%s1 + $0x8] sm:$0xff]
    %v50 = vld [vmem:[%s1 + $0x10] sm:$0xff]
    %v51 = vld [vmem:[%s1 + $0x18] sm:$0xff]
    %v52 = vld [vmem:[%s2] sm:$0xff]
    %v53 = vld [vmem:[%s2 + $0x8] sm:$0xff]
    %v54 = vld [vmem:[%s2 + $0x10] sm:$0xff]
    %v55 = vld [vmem:[%s2 + $0x18] sm:$0xff]
    %v56 = vld [vmem:[%s0] sm:$0xff]
    %v57 = vld [vmem:[%s0 + $0x8] sm:$0xff]
    %v58 = vld [vmem:[%s0 + $0x10] sm:$0xff]
    %v59 = vld [vmem:[%s0 + $0x18] sm:$0xff]
    %v60 = vld [vmem:[%s0 + $0x20] sm:$0xff]
    %v61 = vld [vmem:[%s0 + $0x28] sm:$0xff]
    %v62 = vld [vmem:[%s0 + $0x30] sm:$0xff]
    %v63 = vld [vmem:[%s0 + $0x38] sm:$0xff]
    %v64 = vld [vmem:[%s0 + $0x40] sm:$0xff]
    %v65 = vld [vmem:[%s0 + $0x48] sm:$0xff]
    %v66 = vld [vmem:[%s0 + $0x50] sm:$0xff]
    %v67 = vld [vmem:[%s0 + $0x58] sm:$0xff]
    %v68 = vld [vmem:[%s0 + $0x60] sm:$0xff]
    %v69 = vld [vmem:[%s0 + $0x68] sm:$0xff]
    %v70 = vld [vmem:[%s0 + $0x70] sm:$0xff]
    %v71 = vld [vmem:[%s0 + $0x78] sm:$0xff]
    %v72 = vld [vmem:[%s0 + $0x80] sm:$0xff]
    %v73 = vld [vmem:[%s0 + $0x88] sm:$0xff]
    %v74 = vld [vmem:[%s0 + $0x90] sm:$0xff]
    %v75 = vld [vmem:[%s0 + $0x98] sm:$0xff]
    %v76 = vld [vmem:[%s0 + $0xa0] sm:$0xff]
    %v77 = vld [vmem:[%s0 + $0xa8] sm:$0xff]
    %v78 = vld [vmem:[%s0 + $0xb0] sm:$0xff]
    %v79 = vld [vmem:[%s0 + $0xb8] sm:$0xff]
    %v80 = vld [vmem:[%s4] sm:$0xff]
    %v81 = vld [vmem:[%s4 + $0x8] sm:$0xff]
    %v82 = vld [vmem:[%s4 + $0x10] sm:$0xff]
    %v83 = vld [vmem:[%s4 + $0x18] sm:$0xff]
    %v84 = vld [vmem:[%s4 + $0x20] sm:$0xff]
    %v85 = vld [vmem:[%s4 + $0x28] sm:$0xff]
    %v86 = vld [vmem:[%s4 + $0x30] sm:$0xff]
    %v87 = vld [vmem:[%s4 + $0x38] sm:$0xff]
    %v88 = vld [vmem:[%s4 + $0x40] sm:$0xff]
    %v89 = vld [vmem:[%s4 + $0x48] sm:$0xff]
    %v90 = vld [vmem:[%s4 + $0x50] sm:$0xff]
    %v91 = vld [vmem:[%s4 + $0x58] sm:$0xff]
    %v92 = vld [vmem:[%s4 + $0x60] sm:$0xff]
    %v93 = vld [vmem:[%s4 + $0x68] sm:$0xff]
    %v94 = vld [vmem:[%s4 + $0x70] sm:$0xff]
    %v95 = vld [vmem:[%s4 + $0x78] sm:$0xff]
    %v96 = vld [vmem:[%s4 + $0x80] sm:$0xff]
    %v97 = vld [vmem:[%s4 + $0x88] sm:$0xff]
    %v98 = vld [vmem:[%s4 + $0x90] sm:$0xff]
    %v99 = vld [vmem:[%s4 + $0x98] sm:$0xff]
    %v100 = vld [vmem:[%s4 + $0xa0] sm:$0xff]
    %v101 = vld [vmem:[%s4 + $0xa8] sm:$0xff]
    %v102 = vld [vmem:[%s4 + $0xb0] sm:$0xff]
    %v103 = vld [vmem:[%s4 + $0xb8] sm:$0xff]
    %v104 = vld [vmem:[%s4 + $0xc0] sm:$0xff]
    %v105 = vld [vmem:[%s4 + $0xc8] sm:$0xff]
    %v106 = vld [vmem:[%s4 + $0xd0] sm:$0xff]
    %v107 = vld [vmem:[%s4 + $0xd8] sm:$0xff]
    %v108 = vld [vmem:[%s4 + $0xe0] sm:$0xff]
    %v109 = vld [vmem:[%s4 + $0xe8] sm:$0xff]
    %v110 = vld [vmem:[%s4 + $0xf0] sm:$0xff]
    %v111 = vld [vmem:[%s4 + $0xf8] sm:$0xff]
    %v112 = vld [vmem:[%s4 + $0x100] sm:$0xff]
    %v113 = vld [vmem:[%s4 + $0x108] sm:$0xff]
    %v114 = vld [vmem:[%s4 + $0x110] sm:$0xff]
    %v115 = vld [vmem:[%s4 + $0x118] sm:$0xff]
    %v116 = vld [vmem:[%s4 + $0x120] sm:$0xff]
    %v117 = vld [vmem:[%s4 + $0x128] sm:$0xff]
    %v118 = vld [vmem:[%s4 + $0x130] sm:$0xff]
    %v119 = vld [vmem:[%s4 + $0x138] sm:$0xff]
    %v120 = vld [vmem:[%s4 + $0x140] sm:$0xff]
    %v121 = vld [vmem:[%s4 + $0x148] sm:$0xff]
    %v122 = vld [vmem:[%s4 + $0x150] sm:$0xff]
    %v123 = vld [vmem:[%s4 + $0x158] sm:$0xff]
    %v124 = vld [vmem:[%s4 + $0x160] sm:$0xff]
    %v125 = vld [vmem:[%s4 + $0x168] sm:$0xff]
    %v126 = vld [vmem:[%s4 + $0x170] sm:$0xff]
    %v127 = vld [vmem:[%s4 + $0x178] sm:$0xff]
    %v128 = vld [vmem:[%s4 + $0x180] sm:$0xff]
    %v129 = vld [vmem:[%s4 + $0x188] sm:$0xff]
    %v130 = vld [vmem:[%s4 + $0x190] sm:$0xff]
    %v131 = vld [vmem:[%s4 + $0x198] sm:$0xff]
    %v132 = vld [vmem:[%s4 + $0x1a0] sm:$0xff]
    %v133 = vld [vmem:[%s4 + $0x1a8] sm:$0xff]
    %v134 = vld [vmem:[%s4 + $0x1b0] sm:$0xff]
    %v135 = vld [vmem:[%s4 + $0x1b8] sm:$0xff]
    %v136 = vld [vmem:[%s4 + $0x1c0] sm:$0xff]
    %v137 = vld [vmem:[%s4 + $0x1c8] sm:$0xff]
    %v138 = vld [vmem:[%s4 + $0x1d0] sm:$0xff]
    %v139 = vld [vmem:[%s4 + $0x1d8] sm:$0xff]
    %v140 = vld [vmem:[%s4 + $0x1e0] sm:$0xff]
    %v141 = vld [vmem:[%s4 + $0x1e8] sm:$0xff]
    %v142 = vld [vmem:[%s4 + $0x1f0] sm:$0xff]
    %v143 = vld [vmem:[%s4 + $0x1f8] sm:$0xff]
    %v144 = vld [vmem:[%s4 + $0x200] sm:$0xff]
    %v145 = vld [vmem:[%s4 + $0x208] sm:$0xff]
    %v146 = vld [vmem:[%s4 + $0x210] sm:$0xff]
    %v147 = vld [vmem:[%s4 + $0x218] sm:$0xff]
    %v148 = vld [vmem:[%s4 + $0x220] sm:$0xff]
    %v149 = vld [vmem:[%s4 + $0x228] sm:$0xff]
    %v150 = vld [vmem:[%s4 + $0x230] sm:$0xff]
    %v151 = vld [vmem:[%s4 + $0x238] sm:$0xff]
    %v152 = vld [vmem:[%s4 + $0x240] sm:$0xff]
    %v153 = vld [vmem:[%s4 + $0x248] sm:$0xff]
    %v154 = vld [vmem:[%s4 + $0x250] sm:$0xff]
    %v155 = vld [vmem:[%s4 + $0x258] sm:$0xff]
    %v156 = vld [vmem:[%s4 + $0x260] sm:$0xff]
    %v157 = vld [vmem:[%s4 + $0x268] sm:$0xff]
    %v158 = vld [vmem:[%s4 + $0x270] sm:$0xff]
    %v159 = vld [vmem:[%s4 + $0x278] sm:$0xff]
    %v160 = vld [vmem:[%s4 + $0x280] sm:$0xff]
    %v161 = vld [vmem:[%s4 + $0x288] sm:$0xff]
    %v162 = vld [vmem:[%s4 + $0x290] sm:$0xff]
    %v163 = vld [vmem:[%s4 + $0x298] sm:$0xff]
    %v164 = vld [vmem:[%s4 + $0x2a0] sm:$0xff]
    %v165 = vld [vmem:[%s4 + $0x2a8] sm:$0xff]
    %v166 = vld [vmem:[%s4 + $0x2b0] sm:$0xff]
    %v167 = vld [vmem:[%s4 + $0x2b8] sm:$0xff]
    %v168 = vld [vmem:[%s4 + $0x2c0] sm:$0xff]
    %v169 = vld [vmem:[%s4 + $0x2c8] sm:$0xff]
    %v170 = vld [vmem:[%s4 + $0x2d0] sm:$0xff]
    %v171 = vld [vmem:[%s4 + $0x2d8] sm:$0xff]
    %v172 = vld [vmem:[%s4 + $0x2e0] sm:$0xff]
    %v173 = vld [vmem:[%s4 + $0x2e8] sm:$0xff]
    %v174 = vld [vmem:[%s4 + $0x2f0] sm:$0xff]
    %v175 = vld [vmem:[%s4 + $0x2f8] sm:$0xff]
    %176 = vmatprep.subr.mxu0 0.0
    %177 = vmatpush1.msra.mxu0 %v95
    %178 = vmatprep.subr.mxu0 0.0
    %179 = vmatpush1.msra.mxu0 %v94
    %180 = vmatprep.subr.mxu0 0.0
    %181 = vmatpush1.msra.mxu0 %v93
    %182 = vmatprep.subr.mxu0 0.0
    %183 = vmatpush1.msra.mxu0 %v92
    %184 = vmatprep.subr.mxu0 0.0
    %185 = vmatpush1.msra.mxu0 %v91
    %186 = vmatprep.subr.mxu0 0.0
    %187 = vmatpush1.msra.mxu0 %v90
    %188 = vmatprep.subr.mxu0 0.0
    %189 = vmatpush1.msra.mxu0 %v89
    %190 = vmatprep.subr.mxu0 0.0
    %191 = vmatpush1.msra.mxu0 %v88
    %192 = vmatprep.subr.mxu0 0.0
    %193 = vmatpush1.msra.mxu0 %v87
    %194 = vmatprep.subr.mxu0 0.0
    %195 = vmatpush1.msra.mxu0 %v86
    %196 = vmatprep.subr.mxu0 0.0
    %197 = vmatpush1.msra.mxu0 %v85
    %198 = vmatprep.subr.mxu0 0.0
    %199 = vmatpush1.msra.mxu0 %v84
    %200 = vmatprep.subr.mxu0 0.0
    %201 = vmatpush1.msra.mxu0 %v83
    %202 = vmatprep.subr.mxu0 0.0
    %203 = vmatpush1.msra.mxu0 %v82
    %204 = vmatprep.subr.mxu0 0.0
    %205 = vmatpush1.msra.mxu0 %v81
    %206 = vmatprep.subr.mxu0 0.0
    %207 = vmatpush1.msra.mxu0 %v80
    %208 = vmatprep.subr.mxu0 0.0
    %209 = vmatpush2.msra.mxu0 %v111
    %210 = vmatprep.subr.mxu0 0.0
    %211 = vmatpush2.msra.mxu0 %v110
    %212 = vmatprep.subr.mxu0 0.0
    %213 = vmatpush2.msra.mxu0 %v109
    %214 = vmatprep.subr.mxu0 0.0
    %215 = vmatpush2.msra.mxu0 %v108
    %216 = vmatprep.subr.mxu0 0.0
    %217 = vmatpush2.msra.mxu0 %v107
    %218 = vmatprep.subr.mxu0 0.0
    %219 = vmatpush2.msra.mxu0 %v106
    %220 = vmatprep.subr.mxu0 0.0
    %221 = vmatpush2.msra.mxu0 %v105
    %222 = vmatprep.subr.mxu0 0.0
    %223 = vmatpush2.msra.mxu0 %v104
    %224 = vmatprep.subr.mxu0 0.0
    %225 = vmatpush2.msra.mxu0 %v103
    %226 = vmatprep.subr.mxu0 0.0
    %227 = vmatpush2.msra.mxu0 %v102
    %228 = vmatprep.subr.mxu0 0.0
    %229 = vmatpush2.msra.mxu0 %v101
    %230 = vmatprep.subr.mxu0 0.0
    %231 = vmatpush2.msra.mxu0 %v100
    %232 = vmatprep.subr.mxu0 0.0
    %233 = vmatpush2.msra.mxu0 %v99
    %234 = vmatprep.subr.mxu0 0.0
    %235 = vmatpush2.msra.mxu0 %v98
    %236 = vmatprep.subr.mxu0 0.0
    %237 = vmatpush2.msra.mxu0 %v97
    %238 = vmatprep.subr.mxu0 0.0
    %239 = vmatpush2.msra.mxu0 %v96
    %240 = vmatprep.mubr.f32.mxu0 %v57
    %241 = vmatmul.mubr.f32.gmra.mxu0 %v56
    %v242 = vpop.f32.mrf.mxu0
    %v243 = vadd.f32 0.0, %v242
    %v244 = vpop.f32.mrf.mxu0
    %245 = vmatprep.mubr.f32.mxu0 %v63
    %246 = vmatmul.mubr.f32.gmra.mxu0 %v62
    %v247 = vpop.f32.mrf.mxu0
    %v248 = vadd.f32 0.0, %v247
    %v249 = vpop.f32.mrf.mxu0
    %250 = vmatprep.mubr.f32.mxu0 %v69
    %251 = vmatmul.mubr.f32.gmra.mxu0 %v68
    %v252 = vpop.f32.mrf.mxu0
    %v253 = vadd.f32 0.0, %v252
    %v254 = vpop.f32.mrf.mxu0
    %255 = vmatprep.mubr.f32.mxu0 %v75
    %256 = vmatmul.mubr.f32.gmra.mxu0 %v74
    %v257 = vpop.f32.mrf.mxu0
    %v258 = vadd.f32 0.0, %v257
    %v259 = vpop.f32.mrf.mxu0
    %260 = vdwg.mxu0
    %261 = vmatprep.subr.mxu0 0.0
    %262 = vmatpush1.msra.mxu0 %v127
    %263 = vmatprep.subr.mxu0 0.0
    %264 = vmatpush1.msra.mxu0 %v126
    %265 = vmatprep.subr.mxu0 0.0
    %266 = vmatpush1.msra.mxu0 %v125
    %267 = vmatprep.subr.mxu0 0.0
    %268 = vmatpush1.msra.mxu0 %v124
    %269 = vmatprep.subr.mxu0 0.0
    %270 = vmatpush1.msra.mxu0 %v123
    %271 = vmatprep.subr.mxu0 0.0
    %272 = vmatpush1.msra.mxu0 %v122
    %273 = vmatprep.subr.mxu0 0.0
    %274 = vmatpush1.msra.mxu0 %v121
    %275 = vmatprep.subr.mxu0 0.0
    %276 = vmatpush1.msra.mxu0 %v120
    %277 = vmatprep.subr.mxu0 0.0
    %278 = vmatpush1.msra.mxu0 %v119
    %279 = vmatprep.subr.mxu0 0.0
    %280 = vmatpush1.msra.mxu0 %v118
    %281 = vmatprep.subr.mxu0 0.0
    %282 = vmatpush1.msra.mxu0 %v117
    %283 = vmatprep.subr.mxu0 0.0
    %284 = vmatpush1.msra.mxu0 %v116
    %285 = vmatprep.subr.mxu0 0.0
    %286 = vmatpush1.msra.mxu0 %v115
    %287 = vmatprep.subr.mxu0 0.0
    %288 = vmatpush1.msra.mxu0 %v114
    %289 = vmatprep.subr.mxu0 0.0
    %290 = vmatpush1.msra.mxu0 %v113
    %291 = vmatprep.subr.mxu0 0.0
    %292 = vmatpush1.msra.mxu0 %v112
    %293 = vmatprep.subr.mxu0 0.0
    %294 = vmatpush2.msra.mxu0 %v143
    %295 = vmatprep.subr.mxu0 0.0
    %296 = vmatpush2.msra.mxu0 %v142
    %297 = vmatprep.subr.mxu0 0.0
    %298 = vmatpush2.msra.mxu0 %v141
    %299 = vmatprep.subr.mxu0 0.0
    %300 = vmatpush2.msra.mxu0 %v140
    %301 = vmatprep.subr.mxu0 0.0
    %302 = vmatpush2.msra.mxu0 %v139
    %303 = vmatprep.subr.mxu0 0.0
    %304 = vmatpush2.msra.mxu0 %v138
    %305 = vmatprep.subr.mxu0 0.0
    %306 = vmatpush2.msra.mxu0 %v137
    %307 = vmatprep.subr.mxu0 0.0
    %308 = vmatpush2.msra.mxu0 %v136
    %309 = vmatprep.subr.mxu0 0.0
    %310 = vmatpush2.msra.mxu0 %v135
    %311 = vmatprep.subr.mxu0 0.0
    %312 = vmatpush2.msra.mxu0 %v134
    %313 = vmatprep.subr.mxu0 0.0
    %314 = vmatpush2.msra.mxu0 %v133
    %315 = vmatprep.subr.mxu0 0.0
    %316 = vmatpush2.msra.mxu0 %v132
    %317 = vmatprep.subr.mxu0 0.0
    %318 = vmatpush2.msra.mxu0 %v131
    %319 = vmatprep.subr.mxu0 0.0
    %320 = vmatpush2.msra.mxu0 %v130
    %321 = vmatprep.subr.mxu0 0.0
    %322 = vmatpush2.msra.mxu0 %v129
    %323 = vmatprep.subr.mxu0 0.0
    %324 = vmatpush2.msra.mxu0 %v128
    %325 = vmatprep.mubr.f32.mxu0 %v59
    %326 = vmatmul.mubr.f32.gmra.mxu0 %v58
    %v327 = vpop.f32.mrf.mxu0
    %v328 = vadd.f32 %v243, %v327
    %v329 = vpop.f32.mrf.mxu0
    %330 = vmatprep.mubr.f32.mxu0 %v65
    %331 = vmatmul.mubr.f32.gmra.mxu0 %v64
    %v332 = vpop.f32.mrf.mxu0
    %v333 = vadd.f32 %v248, %v332
    %v334 = vpop.f32.mrf.mxu0
    %335 = vmatprep.mubr.f32.mxu0 %v71
    %336 = vmatmul.mubr.f32.gmra.mxu0 %v70
    %v337 = vpop.f32.mrf.mxu0
    %v338 = vadd.f32 %v253, %v337
    %v339 = vpop.f32.mrf.mxu0
    %340 = vmatprep.mubr.f32.mxu0 %v77
    %341 = vmatmul.mubr.f32.gmra.mxu0 %v76
    %v342 = vpop.f32.mrf.mxu0
    %v343 = vadd.f32 %v258, %v342
    %v344 = vpop.f32.mrf.mxu0
    %345 = vdwg.mxu0
    %346 = vmatprep.subr.mxu0 0.0
    %347 = vmatpush1.msra.mxu0 %v159
    %348 = vmatprep.subr.mxu0 0.0
    %349 = vmatpush1.msra.mxu0 %v158
    %350 = vmatprep.subr.mxu0 0.0
    %351 = vmatpush1.msra.mxu0 %v157
    %352 = vmatprep.subr.mxu0 0.0
    %353 = vmatpush1.msra.mxu0 %v156
    %354 = vmatprep.subr.mxu0 0.0
    %355 = vmatpush1.msra.mxu0 %v155
    %356 = vmatprep.subr.mxu0 0.0
    %357 = vmatpush1.msra.mxu0 %v154
    %358 = vmatprep.subr.mxu0 0.0
    %359 = vmatpush1.msra.mxu0 %v153
    %360 = vmatprep.subr.mxu0 0.0
    %361 = vmatpush1.msra.mxu0 %v152
    %362 = vmatprep.subr.mxu0 0.0
    %363 = vmatpush1.msra.mxu0 %v151
    %364 = vmatprep.subr.mxu0 0.0
    %365 = vmatpush1.msra.mxu0 %v150
    %366 = vmatprep.subr.mxu0 0.0
    %367 = vmatpush1.msra.mxu0 %v149
    %368 = vmatprep.subr.mxu0 0.0
    %369 = vmatpush1.msra.mxu0 %v148
    %370 = vmatprep.subr.mxu0 0.0
    %371 = vmatpush1.msra.mxu0 %v147
    %372 = vmatprep.subr.mxu0 0.0
    %373 = vmatpush1.msra.mxu0 %v146
    %374 = vmatprep.subr.mxu0 0.0
    %375 = vmatpush1.msra.mxu0 %v145
    %376 = vmatprep.subr.mxu0 0.0
    %377 = vmatpush1.msra.mxu0 %v144
    %378 = vmatprep.subr.mxu0 0.0
    %379 = vmatpush2.msra.mxu0 %v175
    %380 = vmatprep.subr.mxu0 0.0
    %381 = vmatpush2.msra.mxu0 %v174
    %382 = vmatprep.subr.mxu0 0.0
    %383 = vmatpush2.msra.mxu0 %v173
    %384 = vmatprep.subr.mxu0 0.0
    %385 = vmatpush2.msra.mxu0 %v172
    %386 = vmatprep.subr.mxu0 0.0
    %387 = vmatpush2.msra.mxu0 %v171
    %388 = vmatprep.subr.mxu0 0.0
    %389 = vmatpush2.msra.mxu0 %v170
    %390 = vmatprep.subr.mxu0 0.0
    %391 = vmatpush2.msra.mxu0 %v169
    %392 = vmatprep.subr.mxu0 0.0
    %393 = vmatpush2.msra.mxu0 %v168
    %394 = vmatprep.subr.mxu0 0.0
    %395 = vmatpush2.msra.mxu0 %v167
    %396 = vmatprep.subr.mxu0 0.0
    %397 = vmatpush2.msra.mxu0 %v166
    %398 = vmatprep.subr.mxu0 0.0
    %399 = vmatpush2.msra.mxu0 %v165
    %400 = vmatprep.subr.mxu0 0.0
    %401 = vmatpush2.msra.mxu0 %v164
    %402 = vmatprep.subr.mxu0 0.0
    %403 = vmatpush2.msra.mxu0 %v163
    %404 = vmatprep.subr.mxu0 0.0
    %405 = vmatpush2.msra.mxu0 %v162
    %406 = vmatprep.subr.mxu0 0.0
    %407 = vmatpush2.msra.mxu0 %v161
    %408 = vmatprep.subr.mxu0 0.0
    %409 = vmatpush2.msra.mxu0 %v160
    %410 = vmatprep.mubr.f32.mxu0 %v61
    %411 = vmatmul.mubr.f32.gmra.mxu0 %v60
    %v412 = vpop.f32.mrf.mxu0
    %v413 = vadd.f32 %v328, %v412
    %v414 = vpop.f32.mrf.mxu0
    %415 = vmatprep.mubr.f32.mxu0 %v67
    %416 = vmatmul.mubr.f32.gmra.mxu0 %v66
    %v417 = vpop.f32.mrf.mxu0
    %v418 = vadd.f32 %v333, %v417
    %v419 = vpop.f32.mrf.mxu0
    %420 = vmatprep.mubr.f32.mxu0 %v73
    %421 = vmatmul.mubr.f32.gmra.mxu0 %v72
    %v422 = vpop.f32.mrf.mxu0
    %v423 = vadd.f32 %v338, %v422
    %v424 = vpop.f32.mrf.mxu0
    %425 = vmatprep.mubr.f32.mxu0 %v79
    %426 = vmatmul.mubr.f32.gmra.mxu0 %v78
    %v427 = vpop.f32.mrf.mxu0
    %v428 = vadd.f32 %v343, %v427
    %v429 = vpop.f32.mrf.mxu0
    %430 = vdwg.mxu0
    %s431 = scalar_lea.vmem %s4, 768
    %v432 = vld [vmem:[%s431] sm:$0xff]
    %v433 = vld [vmem:[%s431 + $0x8] sm:$0xff]
    %v434 = vld [vmem:[%s431 + $0x10] sm:$0xff]
    %v435 = vld [vmem:[%s431 + $0x18] sm:$0xff]
    %v436 = vld [vmem:[%s431 + $0x20] sm:$0xff]
    %v437 = vld [vmem:[%s431 + $0x28] sm:$0xff]
    %v438 = vld [vmem:[%s431 + $0x30] sm:$0xff]
    %v439 = vld [vmem:[%s431 + $0x38] sm:$0xff]
    %v440 = vld [vmem:[%s431 + $0x40] sm:$0xff]
    %v441 = vld [vmem:[%s431 + $0x48] sm:$0xff]
    %v442 = vld [vmem:[%s431 + $0x50] sm:$0xff]
    %v443 = vld [vmem:[%s431 + $0x58] sm:$0xff]
    %v444 = vld [vmem:[%s431 + $0x60] sm:$0xff]
    %v445 = vld [vmem:[%s431 + $0x68] sm:$0xff]
    %v446 = vld [vmem:[%s431 + $0x70] sm:$0xff]
    %v447 = vld [vmem:[%s431 + $0x78] sm:$0xff]
    %v448 = vld [vmem:[%s431 + $0x80] sm:$0xff]
    %v449 = vld [vmem:[%s431 + $0x88] sm:$0xff]
    %v450 = vld [vmem:[%s431 + $0x90] sm:$0xff]
    %v451 = vld [vmem:[%s431 + $0x98] sm:$0xff]
    %v452 = vld [vmem:[%s431 + $0xa0] sm:$0xff]
    %v453 = vld [vmem:[%s431 + $0xa8] sm:$0xff]
    %v454 = vld [vmem:[%s431 + $0xb0] sm:$0xff]
    %v455 = vld [vmem:[%s431 + $0xb8] sm:$0xff]
    %v456 = vld [vmem:[%s431 + $0xc0] sm:$0xff]
    %v457 = vld [vmem:[%s431 + $0xc8] sm:$0xff]
    %v458 = vld [vmem:[%s431 + $0xd0] sm:$0xff]
    %v459 = vld [vmem:[%s431 + $0xd8] sm:$0xff]
    %v460 = vld [vmem:[%s431 + $0xe0] sm:$0xff]
    %v461 = vld [vmem:[%s431 + $0xe8] sm:$0xff]
    %v462 = vld [vmem:[%s431 + $0xf0] sm:$0xff]
    %v463 = vld [vmem:[%s431 + $0xf8] sm:$0xff]
    %v464 = vld [vmem:[%s431 + $0x100] sm:$0xff]
    %v465 = vld [vmem:[%s431 + $0x108] sm:$0xff]
    %v466 = vld [vmem:[%s431 + $0x110] sm:$0xff]
    %v467 = vld [vmem:[%s431 + $0x118] sm:$0xff]
    %v468 = vld [vmem:[%s431 + $0x120] sm:$0xff]
    %v469 = vld [vmem:[%s431 + $0x128] sm:$0xff]
    %v470 = vld [vmem:[%s431 + $0x130] sm:$0xff]
    %v471 = vld [vmem:[%s431 + $0x138] sm:$0xff]
    %v472 = vld [vmem:[%s431 + $0x140] sm:$0xff]
    %v473 = vld [vmem:[%s431 + $0x148] sm:$0xff]
    %v474 = vld [vmem:[%s431 + $0x150] sm:$0xff]
    %v475 = vld [vmem:[%s431 + $0x158] sm:$0xff]
    %v476 = vld [vmem:[%s431 + $0x160] sm:$0xff]
    %v477 = vld [vmem:[%s431 + $0x168] sm:$0xff]
    %v478 = vld [vmem:[%s431 + $0x170] sm:$0xff]
    %v479 = vld [vmem:[%s431 + $0x178] sm:$0xff]
    %v480 = vld [vmem:[%s431 + $0x180] sm:$0xff]
    %v481 = vld [vmem:[%s431 + $0x188] sm:$0xff]
    %v482 = vld [vmem:[%s431 + $0x190] sm:$0xff]
    %v483 = vld [vmem:[%s431 + $0x198] sm:$0xff]
    %v484 = vld [vmem:[%s431 + $0x1a0] sm:$0xff]
    %v485 = vld [vmem:[%s431 + $0x1a8] sm:$0xff]
    %v486 = vld [vmem:[%s431 + $0x1b0] sm:$0xff]
    %v487 = vld [vmem:[%s431 + $0x1b8] sm:$0xff]
    %v488 = vld [vmem:[%s431 + $0x1c0] sm:$0xff]
    %v489 = vld [vmem:[%s431 + $0x1c8] sm:$0xff]
    %v490 = vld [vmem:[%s431 + $0x1d0] sm:$0xff]
    %v491 = vld [vmem:[%s431 + $0x1d8] sm:$0xff]
    %v492 = vld [vmem:[%s431 + $0x1e0] sm:$0xff]
    %v493 = vld [vmem:[%s431 + $0x1e8] sm:$0xff]
    %v494 = vld [vmem:[%s431 + $0x1f0] sm:$0xff]
    %v495 = vld [vmem:[%s431 + $0x1f8] sm:$0xff]
    %v496 = vld [vmem:[%s431 + $0x200] sm:$0xff]
    %v497 = vld [vmem:[%s431 + $0x208] sm:$0xff]
    %v498 = vld [vmem:[%s431 + $0x210] sm:$0xff]
    %v499 = vld [vmem:[%s431 + $0x218] sm:$0xff]
    %v500 = vld [vmem:[%s431 + $0x220] sm:$0xff]
    %v501 = vld [vmem:[%s431 + $0x228] sm:$0xff]
    %v502 = vld [vmem:[%s431 + $0x230] sm:$0xff]
    %v503 = vld [vmem:[%s431 + $0x238] sm:$0xff]
    %v504 = vld [vmem:[%s431 + $0x240] sm:$0xff]
    %v505 = vld [vmem:[%s431 + $0x248] sm:$0xff]
    %v506 = vld [vmem:[%s431 + $0x250] sm:$0xff]
    %v507 = vld [vmem:[%s431 + $0x258] sm:$0xff]
    %v508 = vld [vmem:[%s431 + $0x260] sm:$0xff]
    %v509 = vld [vmem:[%s431 + $0x268] sm:$0xff]
    %v510 = vld [vmem:[%s431 + $0x270] sm:$0xff]
    %v511 = vld [vmem:[%s431 + $0x278] sm:$0xff]
    %v512 = vld [vmem:[%s431 + $0x280] sm:$0xff]
    %v513 = vld [vmem:[%s431 + $0x288] sm:$0xff]
    %v514 = vld [vmem:[%s431 + $0x290] sm:$0xff]
    %v515 = vld [vmem:[%s431 + $0x298] sm:$0xff]
    %v516 = vld [vmem:[%s431 + $0x2a0] sm:$0xff]
    %v517 = vld [vmem:[%s431 + $0x2a8] sm:$0xff]
    %v518 = vld [vmem:[%s431 + $0x2b0] sm:$0xff]
    %v519 = vld [vmem:[%s431 + $0x2b8] sm:$0xff]
    %v520 = vld [vmem:[%s431 + $0x2c0] sm:$0xff]
    %v521 = vld [vmem:[%s431 + $0x2c8] sm:$0xff]
    %v522 = vld [vmem:[%s431 + $0x2d0] sm:$0xff]
    %v523 = vld [vmem:[%s431 + $0x2d8] sm:$0xff]
    %v524 = vld [vmem:[%s431 + $0x2e0] sm:$0xff]
    %v525 = vld [vmem:[%s431 + $0x2e8] sm:$0xff]
    %v526 = vld [vmem:[%s431 + $0x2f0] sm:$0xff]
    %v527 = vld [vmem:[%s431 + $0x2f8] sm:$0xff]
    %s528 = scalar_lea.vmem %s4, 1536
    %v529 = vld [vmem:[%s528] sm:$0xff]
    %v530 = vld [vmem:[%s528 + $0x8] sm:$0xff]
    %v531 = vld [vmem:[%s528 + $0x10] sm:$0xff]
    %v532 = vld [vmem:[%s528 + $0x18] sm:$0xff]
    %v533 = vld [vmem:[%s528 + $0x20] sm:$0xff]
    %v534 = vld [vmem:[%s528 + $0x28] sm:$0xff]
    %v535 = vld [vmem:[%s528 + $0x30] sm:$0xff]
    %v536 = vld [vmem:[%s528 + $0x38] sm:$0xff]
    %v537 = vld [vmem:[%s528 + $0x40] sm:$0xff]
    %v538 = vld [vmem:[%s528 + $0x48] sm:$0xff]
    %v539 = vld [vmem:[%s528 + $0x50] sm:$0xff]
    %v540 = vld [vmem:[%s528 + $0x58] sm:$0xff]
    %v541 = vld [vmem:[%s528 + $0x60] sm:$0xff]
    %v542 = vld [vmem:[%s528 + $0x68] sm:$0xff]
    %v543 = vld [vmem:[%s528 + $0x70] sm:$0xff]
    %v544 = vld [vmem:[%s528 + $0x78] sm:$0xff]
    %v545 = vld [vmem:[%s528 + $0x80] sm:$0xff]
    %v546 = vld [vmem:[%s528 + $0x88] sm:$0xff]
    %v547 = vld [vmem:[%s528 + $0x90] sm:$0xff]
    %v548 = vld [vmem:[%s528 + $0x98] sm:$0xff]
    %v549 = vld [vmem:[%s528 + $0xa0] sm:$0xff]
    %v550 = vld [vmem:[%s528 + $0xa8] sm:$0xff]
    %v551 = vld [vmem:[%s528 + $0xb0] sm:$0xff]
    %v552 = vld [vmem:[%s528 + $0xb8] sm:$0xff]
    %v553 = vld [vmem:[%s528 + $0xc0] sm:$0xff]
    %v554 = vld [vmem:[%s528 + $0xc8] sm:$0xff]
    %v555 = vld [vmem:[%s528 + $0xd0] sm:$0xff]
    %v556 = vld [vmem:[%s528 + $0xd8] sm:$0xff]
    %v557 = vld [vmem:[%s528 + $0xe0] sm:$0xff]
    %v558 = vld [vmem:[%s528 + $0xe8] sm:$0xff]
    %v559 = vld [vmem:[%s528 + $0xf0] sm:$0xff]
    %v560 = vld [vmem:[%s528 + $0xf8] sm:$0xff]
    %v561 = vld [vmem:[%s528 + $0x100] sm:$0xff]
    %v562 = vld [vmem:[%s528 + $0x108] sm:$0xff]
    %v563 = vld [vmem:[%s528 + $0x110] sm:$0xff]
    %v564 = vld [vmem:[%s528 + $0x118] sm:$0xff]
    %v565 = vld [vmem:[%s528 + $0x120] sm:$0xff]
    %v566 = vld [vmem:[%s528 + $0x128] sm:$0xff]
    %v567 = vld [vmem:[%s528 + $0x130] sm:$0xff]
    %v568 = vld [vmem:[%s528 + $0x138] sm:$0xff]
    %v569 = vld [vmem:[%s528 + $0x140] sm:$0xff]
    %v570 = vld [vmem:[%s528 + $0x148] sm:$0xff]
    %v571 = vld [vmem:[%s528 + $0x150] sm:$0xff]
    %v572 = vld [vmem:[%s528 + $0x158] sm:$0xff]
    %v573 = vld [vmem:[%s528 + $0x160] sm:$0xff]
    %v574 = vld [vmem:[%s528 + $0x168] sm:$0xff]
    %v575 = vld [vmem:[%s528 + $0x170] sm:$0xff]
    %v576 = vld [vmem:[%s528 + $0x178] sm:$0xff]
    %v577 = vld [vmem:[%s528 + $0x180] sm:$0xff]
    %v578 = vld [vmem:[%s528 + $0x188] sm:$0xff]
    %v579 = vld [vmem:[%s528 + $0x190] sm:$0xff]
    %v580 = vld [vmem:[%s528 + $0x198] sm:$0xff]
    %v581 = vld [vmem:[%s528 + $0x1a0] sm:$0xff]
    %v582 = vld [vmem:[%s528 + $0x1a8] sm:$0xff]
    %v583 = vld [vmem:[%s528 + $0x1b0] sm:$0xff]
    %v584 = vld [vmem:[%s528 + $0x1b8] sm:$0xff]
    %v585 = vld [vmem:[%s528 + $0x1c0] sm:$0xff]
    %v586 = vld [vmem:[%s528 + $0x1c8] sm:$0xff]
    %v587 = vld [vmem:[%s528 + $0x1d0] sm:$0xff]
    %v588 = vld [vmem:[%s528 + $0x1d8] sm:$0xff]
    %v589 = vld [vmem:[%s528 + $0x1e0] sm:$0xff]
    %v590 = vld [vmem:[%s528 + $0x1e8] sm:$0xff]
    %v591 = vld [vmem:[%s528 + $0x1f0] sm:$0xff]
    %v592 = vld [vmem:[%s528 + $0x1f8] sm:$0xff]
    %v593 = vld [vmem:[%s528 + $0x200] sm:$0xff]
    %v594 = vld [vmem:[%s528 + $0x208] sm:$0xff]
    %v595 = vld [vmem:[%s528 + $0x210] sm:$0xff]
    %v596 = vld [vmem:[%s528 + $0x218] sm:$0xff]
    %v597 = vld [vmem:[%s528 + $0x220] sm:$0xff]
    %v598 = vld [vmem:[%s528 + $0x228] sm:$0xff]
    %v599 = vld [vmem:[%s528 + $0x230] sm:$0xff]
    %v600 = vld [vmem:[%s528 + $0x238] sm:$0xff]
    %v601 = vld [vmem:[%s528 + $0x240] sm:$0xff]
    %v602 = vld [vmem:[%s528 + $0x248] sm:$0xff]
    %v603 = vld [vmem:[%s528 + $0x250] sm:$0xff]
    %v604 = vld [vmem:[%s528 + $0x258] sm:$0xff]
    %v605 = vld [vmem:[%s528 + $0x260] sm:$0xff]
    %v606 = vld [vmem:[%s528 + $0x268] sm:$0xff]
    %v607 = vld [vmem:[%s528 + $0x270] sm:$0xff]
    %v608 = vld [vmem:[%s528 + $0x278] sm:$0xff]
    %v609 = vld [vmem:[%s528 + $0x280] sm:$0xff]
    %v610 = vld [vmem:[%s528 + $0x288] sm:$0xff]
    %v611 = vld [vmem:[%s528 + $0x290] sm:$0xff]
    %v612 = vld [vmem:[%s528 + $0x298] sm:$0xff]
    %v613 = vld [vmem:[%s528 + $0x2a0] sm:$0xff]
    %v614 = vld [vmem:[%s528 + $0x2a8] sm:$0xff]
    %v615 = vld [vmem:[%s528 + $0x2b0] sm:$0xff]
    %v616 = vld [vmem:[%s528 + $0x2b8] sm:$0xff]
    %v617 = vld [vmem:[%s528 + $0x2c0] sm:$0xff]
    %v618 = vld [vmem:[%s528 + $0x2c8] sm:$0xff]
    %v619 = vld [vmem:[%s528 + $0x2d0] sm:$0xff]
    %v620 = vld [vmem:[%s528 + $0x2d8] sm:$0xff]
    %v621 = vld [vmem:[%s528 + $0x2e0] sm:$0xff]
    %v622 = vld [vmem:[%s528 + $0x2e8] sm:$0xff]
    %v623 = vld [vmem:[%s528 + $0x2f0] sm:$0xff]
    %v624 = vld [vmem:[%s528 + $0x2f8] sm:$0xff]
    %625 = vmatprep.subr.mxu0 0.0
    %626 = vmatpush1.msra.mxu0 %v544
    %627 = vmatprep.subr.mxu0 0.0
    %628 = vmatpush1.msra.mxu0 %v543
    %629 = vmatprep.subr.mxu0 0.0
    %630 = vmatpush1.msra.mxu0 %v542
    %631 = vmatprep.subr.mxu0 0.0
    %632 = vmatpush1.msra.mxu0 %v541
    %633 = vmatprep.subr.mxu0 0.0
    %634 = vmatpush1.msra.mxu0 %v540
    %635 = vmatprep.subr.mxu0 0.0
    %636 = vmatpush1.msra.mxu0 %v539
    %637 = vmatprep.subr.mxu0 0.0
    %638 = vmatpush1.msra.mxu0 %v538
    %639 = vmatprep.subr.mxu0 0.0
    %640 = vmatpush1.msra.mxu0 %v537
    %641 = vmatprep.subr.mxu0 0.0
    %642 = vmatpush1.msra.mxu0 %v536
    %643 = vmatprep.subr.mxu0 0.0
    %644 = vmatpush1.msra.mxu0 %v535
    %645 = vmatprep.subr.mxu0 0.0
    %646 = vmatpush1.msra.mxu0 %v534
    %647 = vmatprep.subr.mxu0 0.0
    %648 = vmatpush1.msra.mxu0 %v533
    %649 = vmatprep.subr.mxu0 0.0
    %650 = vmatpush1.msra.mxu0 %v532
    %651 = vmatprep.subr.mxu0 0.0
    %652 = vmatpush1.msra.mxu0 %v531
    %653 = vmatprep.subr.mxu0 0.0
    %654 = vmatpush1.msra.mxu0 %v530
    %655 = vmatprep.subr.mxu0 0.0
    %656 = vmatpush1.msra.mxu0 %v529
    %657 = vmatprep.subr.mxu0 0.0
    %658 = vmatpush2.msra.mxu0 %v560
    %659 = vmatprep.subr.mxu0 0.0
    %660 = vmatpush2.msra.mxu0 %v559
    %661 = vmatprep.subr.mxu0 0.0
    %662 = vmatpush2.msra.mxu0 %v558
    %663 = vmatprep.subr.mxu0 0.0
    %664 = vmatpush2.msra.mxu0 %v557
    %665 = vmatprep.subr.mxu0 0.0
    %666 = vmatpush2.msra.mxu0 %v556
    %667 = vmatprep.subr.mxu0 0.0
    %668 = vmatpush2.msra.mxu0 %v555
    %669 = vmatprep.subr.mxu0 0.0
    %670 = vmatpush2.msra.mxu0 %v554
    %671 = vmatprep.subr.mxu0 0.0
    %672 = vmatpush2.msra.mxu0 %v553
    %673 = vmatprep.subr.mxu0 0.0
    %674 = vmatpush2.msra.mxu0 %v552
    %675 = vmatprep.subr.mxu0 0.0
    %676 = vmatpush2.msra.mxu0 %v551
    %677 = vmatprep.subr.mxu0 0.0
    %678 = vmatpush2.msra.mxu0 %v550
    %679 = vmatprep.subr.mxu0 0.0
    %680 = vmatpush2.msra.mxu0 %v549
    %681 = vmatprep.subr.mxu0 0.0
    %682 = vmatpush2.msra.mxu0 %v548
    %683 = vmatprep.subr.mxu0 0.0
    %684 = vmatpush2.msra.mxu0 %v547
    %685 = vmatprep.subr.mxu0 0.0
    %686 = vmatpush2.msra.mxu0 %v546
    %687 = vmatprep.subr.mxu0 0.0
    %688 = vmatpush2.msra.mxu0 %v545
    %689 = vmatprep.mubr.f32.mxu0 %v57
    %690 = vmatmul.mubr.f32.gmra.mxu0 %v56
    %v691 = vpop.f32.mrf.mxu0
    %v692 = vadd.f32 0.0, %v691
    %v693 = vpop.f32.mrf.mxu0
    %694 = vmatprep.mubr.f32.mxu0 %v63
    %695 = vmatmul.mubr.f32.gmra.mxu0 %v62
    %v696 = vpop.f32.mrf.mxu0
    %v697 = vadd.f32 0.0, %v696
    %v698 = vpop.f32.mrf.mxu0
    %699 = vmatprep.mubr.f32.mxu0 %v69
    %700 = vmatmul.mubr.f32.gmra.mxu0 %v68
    %v701 = vpop.f32.mrf.mxu0
    %v702 = vadd.f32 0.0, %v701
    %v703 = vpop.f32.mrf.mxu0
    %704 = vmatprep.mubr.f32.mxu0 %v75
    %705 = vmatmul.mubr.f32.gmra.mxu0 %v74
    %v706 = vpop.f32.mrf.mxu0
    %v707 = vadd.f32 0.0, %v706
    %v708 = vpop.f32.mrf.mxu0
    %709 = vdwg.mxu0
    %710 = vmatprep.subr.mxu0 0.0
    %711 = vmatpush1.msra.mxu0 %v576
    %712 = vmatprep.subr.mxu0 0.0
    %713 = vmatpush1.msra.mxu0 %v575
    %714 = vmatprep.subr.mxu0 0.0
    %715 = vmatpush1.msra.mxu0 %v574
    %716 = vmatprep.subr.mxu0 0.0
    %717 = vmatpush1.msra.mxu0 %v573
    %718 = vmatprep.subr.mxu0 0.0
    %719 = vmatpush1.msra.mxu0 %v572
    %720 = vmatprep.subr.mxu0 0.0
    %721 = vmatpush1.msra.mxu0 %v571
    %722 = vmatprep.subr.mxu0 0.0
    %723 = vmatpush1.msra.mxu0 %v570
    %724 = vmatprep.subr.mxu0 0.0
    %725 = vmatpush1.msra.mxu0 %v569
    %726 = vmatprep.subr.mxu0 0.0
    %727 = vmatpush1.msra.mxu0 %v568
    %728 = vmatprep.subr.mxu0 0.0
    %729 = vmatpush1.msra.mxu0 %v567
    %730 = vmatprep.subr.mxu0 0.0
    %731 = vmatpush1.msra.mxu0 %v566
    %732 = vmatprep.subr.mxu0 0.0
    %733 = vmatpush1.msra.mxu0 %v565
    %734 = vmatprep.subr.mxu0 0.0
    %735 = vmatpush1.msra.mxu0 %v564
    %736 = vmatprep.subr.mxu0 0.0
    %737 = vmatpush1.msra.mxu0 %v563
    %738 = vmatprep.subr.mxu0 0.0
    %739 = vmatpush1.msra.mxu0 %v562
    %740 = vmatprep.subr.mxu0 0.0
    %741 = vmatpush1.msra.mxu0 %v561
    %742 = vmatprep.subr.mxu0 0.0
    %743 = vmatpush2.msra.mxu0 %v592
    %744 = vmatprep.subr.mxu0 0.0
    %745 = vmatpush2.msra.mxu0 %v591
    %746 = vmatprep.subr.mxu0 0.0
    %747 = vmatpush2.msra.mxu0 %v590
    %748 = vmatprep.subr.mxu0 0.0
    %749 = vmatpush2.msra.mxu0 %v589
    %750 = vmatprep.subr.mxu0 0.0
    %751 = vmatpush2.msra.mxu0 %v588
    %752 = vmatprep.subr.mxu0 0.0
    %753 = vmatpush2.msra.mxu0 %v587
    %754 = vmatprep.subr.mxu0 0.0
    %755 = vmatpush2.msra.mxu0 %v586
    %756 = vmatprep.subr.mxu0 0.0
    %757 = vmatpush2.msra.mxu0 %v585
    %758 = vmatprep.subr.mxu0 0.0
    %759 = vmatpush2.msra.mxu0 %v584
    %760 = vmatprep.subr.mxu0 0.0
    %761 = vmatpush2.msra.mxu0 %v583
    %762 = vmatprep.subr.mxu0 0.0
    %763 = vmatpush2.msra.mxu0 %v582
    %764 = vmatprep.subr.mxu0 0.0
    %765 = vmatpush2.msra.mxu0 %v581
    %766 = vmatprep.subr.mxu0 0.0
    %767 = vmatpush2.msra.mxu0 %v580
    %768 = vmatprep.subr.mxu0 0.0
    %769 = vmatpush2.msra.mxu0 %v579
    %770 = vmatprep.subr.mxu0 0.0
    %771 = vmatpush2.msra.mxu0 %v578
    %772 = vmatprep.subr.mxu0 0.0
    %773 = vmatpush2.msra.mxu0 %v577
    %774 = vmatprep.mubr.f32.mxu0 %v59
    %775 = vmatmul.mubr.f32.gmra.mxu0 %v58
    %v776 = vpop.f32.mrf.mxu0
    %v777 = vadd.f32 %v692, %v776
    %v778 = vpop.f32.mrf.mxu0
    %779 = vmatprep.mubr.f32.mxu0 %v65
    %780 = vmatmul.mubr.f32.gmra.mxu0 %v64
    %v781 = vpop.f32.mrf.mxu0
    %v782 = vadd.f32 %v697, %v781
    %v783 = vpop.f32.mrf.mxu0
    %784 = vmatprep.mubr.f32.mxu0 %v71
    %785 = vmatmul.mubr.f32.gmra.mxu0 %v70
    %v786 = vpop.f32.mrf.mxu0
    %v787 = vadd.f32 %v702, %v786
    %v788 = vpop.f32.mrf.mxu0
    %789 = vmatprep.mubr.f32.mxu0 %v77
    %790 = vmatmul.mubr.f32.gmra.mxu0 %v76
    %v791 = vpop.f32.mrf.mxu0
    %v792 = vadd.f32 %v707, %v791
    %v793 = vpop.f32.mrf.mxu0
    %794 = vdwg.mxu0
    %795 = vmatprep.subr.mxu0 0.0
    %796 = vmatpush1.msra.mxu0 %v608
    %797 = vmatprep.subr.mxu0 0.0
    %798 = vmatpush1.msra.mxu0 %v607
    %799 = vmatprep.subr.mxu0 0.0
    %800 = vmatpush1.msra.mxu0 %v606
    %801 = vmatprep.subr.mxu0 0.0
    %802 = vmatpush1.msra.mxu0 %v605
    %803 = vmatprep.subr.mxu0 0.0
    %804 = vmatpush1.msra.mxu0 %v604
    %805 = vmatprep.subr.mxu0 0.0
    %806 = vmatpush1.msra.mxu0 %v603
    %807 = vmatprep.subr.mxu0 0.0
    %808 = vmatpush1.msra.mxu0 %v602
    %809 = vmatprep.subr.mxu0 0.0
    %810 = vmatpush1.msra.mxu0 %v601
    %811 = vmatprep.subr.mxu0 0.0
    %812 = vmatpush1.msra.mxu0 %v600
    %813 = vmatprep.subr.mxu0 0.0
    %814 = vmatpush1.msra.mxu0 %v599
    %815 = vmatprep.subr.mxu0 0.0
    %816 = vmatpush1.msra.mxu0 %v598
    %817 = vmatprep.subr.mxu0 0.0
    %818 = vmatpush1.msra.mxu0 %v597
    %819 = vmatprep.subr.mxu0 0.0
    %820 = vmatpush1.msra.mxu0 %v596
    %821 = vmatprep.subr.mxu0 0.0
    %822 = vmatpush1.msra.mxu0 %v595
    %823 = vmatprep.subr.mxu0 0.0
    %824 = vmatpush1.msra.mxu0 %v594
    %825 = vmatprep.subr.mxu0 0.0
    %826 = vmatpush1.msra.mxu0 %v593
    %827 = vmatprep.subr.mxu0 0.0
    %828 = vmatpush2.msra.mxu0 %v624
    %829 = vmatprep.subr.mxu0 0.0
    %830 = vmatpush2.msra.mxu0 %v623
    %831 = vmatprep.subr.mxu0 0.0
    %832 = vmatpush2.msra.mxu0 %v622
    %833 = vmatprep.subr.mxu0 0.0
    %834 = vmatpush2.msra.mxu0 %v621
    %835 = vmatprep.subr.mxu0 0.0
    %836 = vmatpush2.msra.mxu0 %v620
    %837 = vmatprep.subr.mxu0 0.0
    %838 = vmatpush2.msra.mxu0 %v619
    %839 = vmatprep.subr.mxu0 0.0
    %840 = vmatpush2.msra.mxu0 %v618
    %841 = vmatprep.subr.mxu0 0.0
    %842 = vmatpush2.msra.mxu0 %v617
    %843 = vmatprep.subr.mxu0 0.0
    %844 = vmatpush2.msra.mxu0 %v616
    %845 = vmatprep.subr.mxu0 0.0
    %846 = vmatpush2.msra.mxu0 %v615
    %847 = vmatprep.subr.mxu0 0.0
    %848 = vmatpush2.msra.mxu0 %v614
    %849 = vmatprep.subr.mxu0 0.0
    %850 = vmatpush2.msra.mxu0 %v613
    %851 = vmatprep.subr.mxu0 0.0
    %852 = vmatpush2.msra.mxu0 %v612
    %853 = vmatprep.subr.mxu0 0.0
    %854 = vmatpush2.msra.mxu0 %v611
    %855 = vmatprep.subr.mxu0 0.0
    %856 = vmatpush2.msra.mxu0 %v610
    %857 = vmatprep.subr.mxu0 0.0
    %858 = vmatpush2.msra.mxu0 %v609
    %859 = vmatprep.mubr.f32.mxu0 %v61
    %860 = vmatmul.mubr.f32.gmra.mxu0 %v60
    %v861 = vpop.f32.mrf.mxu0
    %v862 = vadd.f32 %v777, %v861
    %v863 = vpop.f32.mrf.mxu0
    %864 = vmatprep.mubr.f32.mxu0 %v67
    %865 = vmatmul.mubr.f32.gmra.mxu0 %v66
    %v866 = vpop.f32.mrf.mxu0
    %v867 = vadd.f32 %v782, %v866
    %v868 = vpop.f32.mrf.mxu0
    %869 = vmatprep.mubr.f32.mxu0 %v73
    %870 = vmatmul.mubr.f32.gmra.mxu0 %v72
    %v871 = vpop.f32.mrf.mxu0
    %v872 = vadd.f32 %v787, %v871
    %v873 = vpop.f32.mrf.mxu0
    %874 = vmatprep.mubr.f32.mxu0 %v79
    %875 = vmatmul.mubr.f32.gmra.mxu0 %v78
    %v876 = vpop.f32.mrf.mxu0
    %v877 = vadd.f32 %v792, %v876
    %v878 = vpop.f32.mrf.mxu0
    %879 = vdwg.mxu0
    %v880 = vrot.slane %v413, 7
    %v881 = vrot.slane %v418, 7
    %v882 = vrot.slane %v423, 7
    %v883 = vrot.slane %v428, 7
    %v884 = vlaneseq
    %v885 = vshrl.u32 %v884, 7
    %vm886 = vcmp.lt.s32.totalorder %v885, 1
    %v887 = vsel %vm886, %v882, %v883
    %v888 = vsel %vm886, %v881, %v882
    %v889 = vsel %vm886, %v880, %v881
    %v890 = vsel %vm886, %v883, %v880
    %892 = vset.pattern.permute.xlu0 0
    %893 = vperm.xlu0 %892, %v48
    %v894 = vpop.permute.xlu0 %893
    %897 = vset.pattern.permute.xlu0 0
    %898 = vperm.xlu0 %897, %v49
    %v899 = vpop.permute.xlu0 %898
    %902 = vset.pattern.permute.xlu0 0
    %903 = vperm.xlu0 %902, %v50
    %v904 = vpop.permute.xlu0 %903
    %907 = vset.pattern.permute.xlu0 0
    %908 = vperm.xlu0 %907, %v51
    %v909 = vpop.permute.xlu0 %908
    %v911 = vmul.f32 %v890, %v894
    %v912 = vmul.f32 %v889, %v899
    %v913 = vmul.f32 %v888, %v904
    %v914 = vmul.f32 %v887, %v909
    %915 = vmatprep.subr.mxu0 0.0
    %916 = vmatpush1.msra.mxu0 %v447
    %917 = vmatprep.subr.mxu0 0.0
    %918 = vmatpush1.msra.mxu0 %v446
    %919 = vmatprep.subr.mxu0 0.0
    %920 = vmatpush1.msra.mxu0 %v445
    %921 = vmatprep.subr.mxu0 0.0
    %922 = vmatpush1.msra.mxu0 %v444
    %923 = vmatprep.subr.mxu0 0.0
    %924 = vmatpush1.msra.mxu0 %v443
    %925 = vmatprep.subr.mxu0 0.0
    %926 = vmatpush1.msra.mxu0 %v442
    %927 = vmatprep.subr.mxu0 0.0
    %928 = vmatpush1.msra.mxu0 %v441
    %929 = vmatprep.subr.mxu0 0.0
    %930 = vmatpush1.msra.mxu0 %v440
    %931 = vmatprep.subr.mxu0 0.0
    %932 = vmatpush1.msra.mxu0 %v439
    %933 = vmatprep.subr.mxu0 0.0
    %934 = vmatpush1.msra.mxu0 %v438
    %935 = vmatprep.subr.mxu0 0.0
    %936 = vmatpush1.msra.mxu0 %v437
    %937 = vmatprep.subr.mxu0 0.0
    %938 = vmatpush1.msra.mxu0 %v436
    %939 = vmatprep.subr.mxu0 0.0
    %940 = vmatpush1.msra.mxu0 %v435
    %941 = vmatprep.subr.mxu0 0.0
    %942 = vmatpush1.msra.mxu0 %v434
    %943 = vmatprep.subr.mxu0 0.0
    %944 = vmatpush1.msra.mxu0 %v433
    %945 = vmatprep.subr.mxu0 0.0
    %946 = vmatpush1.msra.mxu0 %v432
    %947 = vmatprep.subr.mxu0 0.0
    %948 = vmatpush2.msra.mxu0 %v463
    %949 = vmatprep.subr.mxu0 0.0
    %950 = vmatpush2.msra.mxu0 %v462
    %951 = vmatprep.subr.mxu0 0.0
    %952 = vmatpush2.msra.mxu0 %v461
    %953 = vmatprep.subr.mxu0 0.0
    %954 = vmatpush2.msra.mxu0 %v460
    %955 = vmatprep.subr.mxu0 0.0
    %956 = vmatpush2.msra.mxu0 %v459
    %957 = vmatprep.subr.mxu0 0.0
    %958 = vmatpush2.msra.mxu0 %v458
    %959 = vmatprep.subr.mxu0 0.0
    %960 = vmatpush2.msra.mxu0 %v457
    %961 = vmatprep.subr.mxu0 0.0
    %962 = vmatpush2.msra.mxu0 %v456
    %963 = vmatprep.subr.mxu0 0.0
    %964 = vmatpush2.msra.mxu0 %v455
    %965 = vmatprep.subr.mxu0 0.0
    %966 = vmatpush2.msra.mxu0 %v454
    %967 = vmatprep.subr.mxu0 0.0
    %968 = vmatpush2.msra.mxu0 %v453
    %969 = vmatprep.subr.mxu0 0.0
    %970 = vmatpush2.msra.mxu0 %v452
    %971 = vmatprep.subr.mxu0 0.0
    %972 = vmatpush2.msra.mxu0 %v451
    %973 = vmatprep.subr.mxu0 0.0
    %974 = vmatpush2.msra.mxu0 %v450
    %975 = vmatprep.subr.mxu0 0.0
    %976 = vmatpush2.msra.mxu0 %v449
    %977 = vmatprep.subr.mxu0 0.0
    %978 = vmatpush2.msra.mxu0 %v448
    %979 = vmatprep.mubr.f32.mxu0 %v57
    %980 = vmatmul.mubr.f32.gmra.mxu0 %v56
    %v981 = vpop.f32.mrf.mxu0
    %v982 = vadd.f32 %v911, %v981
    %v983 = vpop.f32.mrf.mxu0
    %984 = vmatprep.mubr.f32.mxu0 %v63
    %985 = vmatmul.mubr.f32.gmra.mxu0 %v62
    %v986 = vpop.f32.mrf.mxu0
    %v987 = vadd.f32 %v912, %v986
    %v988 = vpop.f32.mrf.mxu0
    %989 = vmatprep.mubr.f32.mxu0 %v69
    %990 = vmatmul.mubr.f32.gmra.mxu0 %v68
    %v991 = vpop.f32.mrf.mxu0
    %v992 = vadd.f32 %v913, %v991
    %v993 = vpop.f32.mrf.mxu0
    %994 = vmatprep.mubr.f32.mxu0 %v75
    %995 = vmatmul.mubr.f32.gmra.mxu0 %v74
    %v996 = vpop.f32.mrf.mxu0
    %v997 = vadd.f32 %v914, %v996
    %v998 = vpop.f32.mrf.mxu0
    %999 = vdwg.mxu0
    %1000 = vmatprep.subr.mxu0 0.0
    %1001 = vmatpush1.msra.mxu0 %v479
    %1002 = vmatprep.subr.mxu0 0.0
    %1003 = vmatpush1.msra.mxu0 %v478
    %1004 = vmatprep.subr.mxu0 0.0
    %1005 = vmatpush1.msra.mxu0 %v477
    %1006 = vmatprep.subr.mxu0 0.0
    %1007 = vmatpush1.msra.mxu0 %v476
    %1008 = vmatprep.subr.mxu0 0.0
    %1009 = vmatpush1.msra.mxu0 %v475
    %1010 = vmatprep.subr.mxu0 0.0
    %1011 = vmatpush1.msra.mxu0 %v474
    %1012 = vmatprep.subr.mxu0 0.0
    %1013 = vmatpush1.msra.mxu0 %v473
    %1014 = vmatprep.subr.mxu0 0.0
    %1015 = vmatpush1.msra.mxu0 %v472
    %1016 = vmatprep.subr.mxu0 0.0
    %1017 = vmatpush1.msra.mxu0 %v471
    %1018 = vmatprep.subr.mxu0 0.0
    %1019 = vmatpush1.msra.mxu0 %v470
    %1020 = vmatprep.subr.mxu0 0.0
    %1021 = vmatpush1.msra.mxu0 %v469
    %1022 = vmatprep.subr.mxu0 0.0
    %1023 = vmatpush1.msra.mxu0 %v468
    %1024 = vmatprep.subr.mxu0 0.0
    %1025 = vmatpush1.msra.mxu0 %v467
    %1026 = vmatprep.subr.mxu0 0.0
    %1027 = vmatpush1.msra.mxu0 %v466
    %1028 = vmatprep.subr.mxu0 0.0
    %1029 = vmatpush1.msra.mxu0 %v465
    %1030 = vmatprep.subr.mxu0 0.0
    %1031 = vmatpush1.msra.mxu0 %v464
    %1032 = vmatprep.subr.mxu0 0.0
    %1033 = vmatpush2.msra.mxu0 %v495
    %1034 = vmatprep.subr.mxu0 0.0
    %1035 = vmatpush2.msra.mxu0 %v494
    %1036 = vmatprep.subr.mxu0 0.0
    %1037 = vmatpush2.msra.mxu0 %v493
    %1038 = vmatprep.subr.mxu0 0.0
    %1039 = vmatpush2.msra.mxu0 %v492
    %1040 = vmatprep.subr.mxu0 0.0
    %1041 = vmatpush2.msra.mxu0 %v491
    %1042 = vmatprep.subr.mxu0 0.0
    %1043 = vmatpush2.msra.mxu0 %v490
    %1044 = vmatprep.subr.mxu0 0.0
    %1045 = vmatpush2.msra.mxu0 %v489
    %1046 = vmatprep.subr.mxu0 0.0
    %1047 = vmatpush2.msra.mxu0 %v488
    %1048 = vmatprep.subr.mxu0 0.0
    %1049 = vmatpush2.msra.mxu0 %v487
    %1050 = vmatprep.subr.mxu0 0.0
    %1051 = vmatpush2.msra.mxu0 %v486
    %1052 = vmatprep.subr.mxu0 0.0
    %1053 = vmatpush2.msra.mxu0 %v485
    %1054 = vmatprep.subr.mxu0 0.0
    %1055 = vmatpush2.msra.mxu0 %v484
    %1056 = vmatprep.subr.mxu0 0.0
    %1057 = vmatpush2.msra.mxu0 %v483
    %1058 = vmatprep.subr.mxu0 0.0
    %1059 = vmatpush2.msra.mxu0 %v482
    %1060 = vmatprep.subr.mxu0 0.0
    %1061 = vmatpush2.msra.mxu0 %v481
    %1062 = vmatprep.subr.mxu0 0.0
    %1063 = vmatpush2.msra.mxu0 %v480
    %1064 = vmatprep.mubr.f32.mxu0 %v59
    %1065 = vmatmul.mubr.f32.gmra.mxu0 %v58
    %v1066 = vpop.f32.mrf.mxu0
    %v1067 = vadd.f32 %v982, %v1066
    %v1068 = vpop.f32.mrf.mxu0
    %1069 = vmatprep.mubr.f32.mxu0 %v65
    %1070 = vmatmul.mubr.f32.gmra.mxu0 %v64
    %v1071 = vpop.f32.mrf.mxu0
    %v1072 = vadd.f32 %v987, %v1071
    %v1073 = vpop.f32.mrf.mxu0
    %1074 = vmatprep.mubr.f32.mxu0 %v71
    %1075 = vmatmul.mubr.f32.gmra.mxu0 %v70
    %v1076 = vpop.f32.mrf.mxu0
    %v1077 = vadd.f32 %v992, %v1076
    %v1078 = vpop.f32.mrf.mxu0
    %1079 = vmatprep.mubr.f32.mxu0 %v77
    %1080 = vmatmul.mubr.f32.gmra.mxu0 %v76
    %v1081 = vpop.f32.mrf.mxu0
    %v1082 = vadd.f32 %v997, %v1081
    %v1083 = vpop.f32.mrf.mxu0
    %1084 = vdwg.mxu0
    %1085 = vmatprep.subr.mxu0 0.0
    %1086 = vmatpush1.msra.mxu0 %v511
    %1087 = vmatprep.subr.mxu0 0.0
    %1088 = vmatpush1.msra.mxu0 %v510
    %1089 = vmatprep.subr.mxu0 0.0
    %1090 = vmatpush1.msra.mxu0 %v509
    %1091 = vmatprep.subr.mxu0 0.0
    %1092 = vmatpush1.msra.mxu0 %v508
    %1093 = vmatprep.subr.mxu0 0.0
    %1094 = vmatpush1.msra.mxu0 %v507
    %1095 = vmatprep.subr.mxu0 0.0
    %1096 = vmatpush1.msra.mxu0 %v506
    %1097 = vmatprep.subr.mxu0 0.0
    %1098 = vmatpush1.msra.mxu0 %v505
    %1099 = vmatprep.subr.mxu0 0.0
    %1100 = vmatpush1.msra.mxu0 %v504
    %1101 = vmatprep.subr.mxu0 0.0
    %1102 = vmatpush1.msra.mxu0 %v503
    %1103 = vmatprep.subr.mxu0 0.0
    %1104 = vmatpush1.msra.mxu0 %v502
    %1105 = vmatprep.subr.mxu0 0.0
    %1106 = vmatpush1.msra.mxu0 %v501
    %1107 = vmatprep.subr.mxu0 0.0
    %1108 = vmatpush1.msra.mxu0 %v500
    %1109 = vmatprep.subr.mxu0 0.0
    %1110 = vmatpush1.msra.mxu0 %v499
    %1111 = vmatprep.subr.mxu0 0.0
    %1112 = vmatpush1.msra.mxu0 %v498
    %1113 = vmatprep.subr.mxu0 0.0
    %1114 = vmatpush1.msra.mxu0 %v497
    %1115 = vmatprep.subr.mxu0 0.0
    %1116 = vmatpush1.msra.mxu0 %v496
    %1117 = vmatprep.subr.mxu0 0.0
    %1118 = vmatpush2.msra.mxu0 %v527
    %1119 = vmatprep.subr.mxu0 0.0
    %1120 = vmatpush2.msra.mxu0 %v526
    %1121 = vmatprep.subr.mxu0 0.0
    %1122 = vmatpush2.msra.mxu0 %v525
    %1123 = vmatprep.subr.mxu0 0.0
    %1124 = vmatpush2.msra.mxu0 %v524
    %1125 = vmatprep.subr.mxu0 0.0
    %1126 = vmatpush2.msra.mxu0 %v523
    %1127 = vmatprep.subr.mxu0 0.0
    %1128 = vmatpush2.msra.mxu0 %v522
    %1129 = vmatprep.subr.mxu0 0.0
    %1130 = vmatpush2.msra.mxu0 %v521
    %1131 = vmatprep.subr.mxu0 0.0
    %1132 = vmatpush2.msra.mxu0 %v520
    %1133 = vmatprep.subr.mxu0 0.0
    %1134 = vmatpush2.msra.mxu0 %v519
    %1135 = vmatprep.subr.mxu0 0.0
    %1136 = vmatpush2.msra.mxu0 %v518
    %1137 = vmatprep.subr.mxu0 0.0
    %1138 = vmatpush2.msra.mxu0 %v517
    %1139 = vmatprep.subr.mxu0 0.0
    %1140 = vmatpush2.msra.mxu0 %v516
    %1141 = vmatprep.subr.mxu0 0.0
    %1142 = vmatpush2.msra.mxu0 %v515
    %1143 = vmatprep.subr.mxu0 0.0
    %1144 = vmatpush2.msra.mxu0 %v514
    %1145 = vmatprep.subr.mxu0 0.0
    %1146 = vmatpush2.msra.mxu0 %v513
    %1147 = vmatprep.subr.mxu0 0.0
    %1148 = vmatpush2.msra.mxu0 %v512
    %1149 = vmatprep.mubr.f32.mxu0 %v61
    %1150 = vmatmul.mubr.f32.gmra.mxu0 %v60
    %v1151 = vpop.f32.mrf.mxu0
    %v1152 = vadd.f32 %v1067, %v1151
    %v1153 = vpop.f32.mrf.mxu0
    %1154 = vmatprep.mubr.f32.mxu0 %v67
    %1155 = vmatmul.mubr.f32.gmra.mxu0 %v66
    %v1156 = vpop.f32.mrf.mxu0
    %v1157 = vadd.f32 %v1072, %v1156
    %v1158 = vpop.f32.mrf.mxu0
    %1159 = vmatprep.mubr.f32.mxu0 %v73
    %1160 = vmatmul.mubr.f32.gmra.mxu0 %v72
    %v1161 = vpop.f32.mrf.mxu0
    %v1162 = vadd.f32 %v1077, %v1161
    %v1163 = vpop.f32.mrf.mxu0
    %1164 = vmatprep.mubr.f32.mxu0 %v79
    %1165 = vmatmul.mubr.f32.gmra.mxu0 %v78
    %v1166 = vpop.f32.mrf.mxu0
    %v1167 = vadd.f32 %v1082, %v1166
    %v1168 = vpop.f32.mrf.mxu0
    %1169 = vdwg.mxu0
    %v1170 = vrot.slane %v862, 1
    %v1171 = vrot.slane %v867, 1
    %v1172 = vrot.slane %v872, 1
    %v1173 = vrot.slane %v877, 1
    %vm1174 = vcmp.lt.s32.totalorder %v885, 7
    %v1175 = vsel %vm1174, %v1172, %v1173
    %v1176 = vsel %vm1174, %v1171, %v1172
    %v1177 = vsel %vm1174, %v1170, %v1171
    %v1178 = vsel %vm1174, %v1173, %v1170
    %1180 = vset.pattern.permute.xlu0 0
    %1181 = vperm.xlu0 %1180, %v52
    %v1182 = vpop.permute.xlu0 %1181
    %1185 = vset.pattern.permute.xlu0 0
    %1186 = vperm.xlu0 %1185, %v53
    %v1187 = vpop.permute.xlu0 %1186
    %1190 = vset.pattern.permute.xlu0 0
    %1191 = vperm.xlu0 %1190, %v54
    %v1192 = vpop.permute.xlu0 %1191
    %1195 = vset.pattern.permute.xlu0 0
    %1196 = vperm.xlu0 %1195, %v55
    %v1197 = vpop.permute.xlu0 %1196
    %v1199 = vmul.f32 %v1177, %v1182
    %v1200 = vmul.f32 %v1176, %v1187
    %v1201 = vmul.f32 %v1175, %v1192
    %v1202 = vmul.f32 %v1178, %v1197
    %v1203 = vadd.f32 %v1152, %v1199
    %v1204 = vadd.f32 %v1157, %v1200
    %v1205 = vadd.f32 %v1162, %v1201
    %v1206 = vadd.f32 %v1167, %v1202
    %v1207 = vld [vmem:[%s5] sm:$0x1]
    %v1209 = vlaneseq
    %v1210 = vshrl.u32 %v1209, 7
    %v1211 = vsub.s32 0, %v1210
    %v1212 = vrot.slane %v1207, %v1211
    %v1214 = vadd.f32 %v1203, %v1212
    %v1215 = vadd.f32 %v1204, %v1212
    %v1216 = vadd.f32 %v1205, %v1212
    %v1217 = vadd.f32 %v1206, %v1212
    %v1218 = vmax.f32 %v1214, 0.0
    %v1219 = vmax.f32 %v1215, 0.0
    %v1220 = vmax.f32 %v1216, 0.0
    %v1221 = vmax.f32 %v1217, 0.0
    %v1222 = vld [vmem:[%s6] sm:$0xff]
    %v1223 = vld [vmem:[%s6 + $0x8] sm:$0xff]
    %v1224 = vld [vmem:[%s6 + $0x10] sm:$0xff]
    %v1225 = vld [vmem:[%s6 + $0x18] sm:$0xff]
    %v1226 = vld [vmem:[%s6 + $0x20] sm:$0xff]
    %v1227 = vld [vmem:[%s6 + $0x28] sm:$0xff]
    %v1228 = vld [vmem:[%s6 + $0x30] sm:$0xff]
    %v1229 = vld [vmem:[%s6 + $0x38] sm:$0xff]
    %vm1230 = vcmask 523264
    %v1232 = vsel %vm1230, %v1218, 0
    %v1235 = vsel %vm1230, %v1219, 0
    %v1238 = vsel %vm1230, %v1220, 0
    %v1241 = vsel %vm1230, %v1221, 0
    %1243 = vmatprep.subr.mxu0 0.0
    %1244 = vmatpush1.msra.mxu0 0.0
    %1245 = vmatprep.subr.mxu0 0.0
    %1246 = vmatpush1.msra.mxu0 0.0
    %1247 = vmatprep.subr.mxu0 0.0
    %1248 = vmatpush1.msra.mxu0 0.0
    %1249 = vmatprep.subr.mxu0 0.0
    %1250 = vmatpush1.msra.mxu0 0.0
    %1251 = vmatprep.subr.mxu0 0.0
    %1252 = vmatpush1.msra.mxu0 0.0
    %1253 = vmatprep.subr.mxu0 0.0
    %1254 = vmatpush1.msra.mxu0 0.0
    %1255 = vmatprep.subr.mxu0 0.0
    %1256 = vmatpush1.msra.mxu0 0.0
    %1257 = vmatprep.subr.mxu0 0.0
    %1258 = vmatpush1.msra.mxu0 0.0
    %1259 = vmatprep.subr.mxu0 0.0
    %1260 = vmatpush1.msra.mxu0 %v1229
    %1261 = vmatprep.subr.mxu0 0.0
    %1262 = vmatpush1.msra.mxu0 %v1228
    %1263 = vmatprep.subr.mxu0 0.0
    %1264 = vmatpush1.msra.mxu0 %v1227
    %1265 = vmatprep.subr.mxu0 0.0
    %1266 = vmatpush1.msra.mxu0 %v1226
    %1267 = vmatprep.subr.mxu0 0.0
    %1268 = vmatpush1.msra.mxu0 %v1225
    %1269 = vmatprep.subr.mxu0 0.0
    %1270 = vmatpush1.msra.mxu0 %v1224
    %1271 = vmatprep.subr.mxu0 0.0
    %1272 = vmatpush1.msra.mxu0 %v1223
    %1273 = vmatprep.subr.mxu0 0.0
    %1274 = vmatpush1.msra.mxu0 %v1222
    %1275 = vmatprep.subr.mxu0 0.0
    %1276 = vmatpush2.msra.mxu0 0.0
    %1277 = vmatprep.subr.mxu0 0.0
    %1278 = vmatpush2.msra.mxu0 0.0
    %1279 = vmatprep.subr.mxu0 0.0
    %1280 = vmatpush2.msra.mxu0 0.0
    %1281 = vmatprep.subr.mxu0 0.0
    %1282 = vmatpush2.msra.mxu0 0.0
    %1283 = vmatprep.subr.mxu0 0.0
    %1284 = vmatpush2.msra.mxu0 0.0
    %1285 = vmatprep.subr.mxu0 0.0
    %1286 = vmatpush2.msra.mxu0 0.0
    %1287 = vmatprep.subr.mxu0 0.0
    %1288 = vmatpush2.msra.mxu0 0.0
    %1289 = vmatprep.subr.mxu0 0.0
    %1290 = vmatpush2.msra.mxu0 0.0
    %1291 = vmatprep.subr.mxu0 0.0
    %1292 = vmatpush2.msra.mxu0 0.0
    %1293 = vmatprep.subr.mxu0 0.0
    %1294 = vmatpush2.msra.mxu0 0.0
    %1295 = vmatprep.subr.mxu0 0.0
    %1296 = vmatpush2.msra.mxu0 0.0
    %1297 = vmatprep.subr.mxu0 0.0
    %1298 = vmatpush2.msra.mxu0 0.0
    %1299 = vmatprep.subr.mxu0 0.0
    %1300 = vmatpush2.msra.mxu0 0.0
    %1301 = vmatprep.subr.mxu0 0.0
    %1302 = vmatpush2.msra.mxu0 0.0
    %1303 = vmatprep.subr.mxu0 0.0
    %1304 = vmatpush2.msra.mxu0 0.0
    %1305 = vmatprep.subr.mxu0 0.0
    %1306 = vmatpush2.msra.mxu0 0.0
    %1307 = vmatprep.mubr.f32.mxu0 0.0
    %1308 = vmatmul.mubr.f32.gmra.mxu0 %v1232
    %v1309 = vpop.f32.mrf.mxu0
    %v1310 = vadd.f32 0.0, %v1309
    %v1311 = vpop.f32.mrf.mxu0
    %1312 = vmatprep.mubr.f32.mxu0 0.0
    %1313 = vmatmul.mubr.f32.gmra.mxu0 %v1235
    %v1314 = vpop.f32.mrf.mxu0
    %v1315 = vadd.f32 0.0, %v1314
    %v1316 = vpop.f32.mrf.mxu0
    %1317 = vmatprep.mubr.f32.mxu0 0.0
    %1318 = vmatmul.mubr.f32.gmra.mxu0 %v1238
    %v1319 = vpop.f32.mrf.mxu0
    %v1320 = vadd.f32 0.0, %v1319
    %v1321 = vpop.f32.mrf.mxu0
    %1322 = vmatprep.mubr.f32.mxu0 0.0
    %1323 = vmatmul.mubr.f32.gmra.mxu0 %v1241
    %v1324 = vpop.f32.mrf.mxu0
    %v1325 = vadd.f32 0.0, %v1324
    %v1326 = vpop.f32.mrf.mxu0
    %1327 = vdwg.mxu0
    %s1328 = scalar_lea.vmem %s6, 64
    %v1329 = vld [vmem:[%s1328] sm:$0xff]
    %v1330 = vld [vmem:[%s1328 + $0x8] sm:$0xff]
    %v1331 = vld [vmem:[%s1328 + $0x10] sm:$0xff]
    %v1332 = vld [vmem:[%s1328 + $0x18] sm:$0xff]
    %v1333 = vld [vmem:[%s1328 + $0x20] sm:$0xff]
    %v1334 = vld [vmem:[%s1328 + $0x28] sm:$0xff]
    %v1335 = vld [vmem:[%s1328 + $0x30] sm:$0xff]
    %v1336 = vld [vmem:[%s1328 + $0x38] sm:$0xff]
    %s1337 = scalar_lea.vmem %s6, 128
    %v1338 = vld [vmem:[%s1337] sm:$0xff]
    %v1339 = vld [vmem:[%s1337 + $0x8] sm:$0xff]
    %v1340 = vld [vmem:[%s1337 + $0x10] sm:$0xff]
    %v1341 = vld [vmem:[%s1337 + $0x18] sm:$0xff]
    %v1342 = vld [vmem:[%s1337 + $0x20] sm:$0xff]
    %v1343 = vld [vmem:[%s1337 + $0x28] sm:$0xff]
    %v1344 = vld [vmem:[%s1337 + $0x30] sm:$0xff]
    %v1345 = vld [vmem:[%s1337 + $0x38] sm:$0xff]
    %1346 = vmatprep.subr.mxu0 0.0
    %1347 = vmatpush1.msra.mxu0 0.0
    %1348 = vmatprep.subr.mxu0 0.0
    %1349 = vmatpush1.msra.mxu0 0.0
    %1350 = vmatprep.subr.mxu0 0.0
    %1351 = vmatpush1.msra.mxu0 0.0
    %1352 = vmatprep.subr.mxu0 0.0
    %1353 = vmatpush1.msra.mxu0 0.0
    %1354 = vmatprep.subr.mxu0 0.0
    %1355 = vmatpush1.msra.mxu0 0.0
    %1356 = vmatprep.subr.mxu0 0.0
    %1357 = vmatpush1.msra.mxu0 0.0
    %1358 = vmatprep.subr.mxu0 0.0
    %1359 = vmatpush1.msra.mxu0 0.0
    %1360 = vmatprep.subr.mxu0 0.0
    %1361 = vmatpush1.msra.mxu0 0.0
    %1362 = vmatprep.subr.mxu0 0.0
    %1363 = vmatpush1.msra.mxu0 %v1345
    %1364 = vmatprep.subr.mxu0 0.0
    %1365 = vmatpush1.msra.mxu0 %v1344
    %1366 = vmatprep.subr.mxu0 0.0
    %1367 = vmatpush1.msra.mxu0 %v1343
    %1368 = vmatprep.subr.mxu0 0.0
    %1369 = vmatpush1.msra.mxu0 %v1342
    %1370 = vmatprep.subr.mxu0 0.0
    %1371 = vmatpush1.msra.mxu0 %v1341
    %1372 = vmatprep.subr.mxu0 0.0
    %1373 = vmatpush1.msra.mxu0 %v1340
    %1374 = vmatprep.subr.mxu0 0.0
    %1375 = vmatpush1.msra.mxu0 %v1339
    %1376 = vmatprep.subr.mxu0 0.0
    %1377 = vmatpush1.msra.mxu0 %v1338
    %1378 = vmatprep.subr.mxu0 0.0
    %1379 = vmatpush2.msra.mxu0 0.0
    %1380 = vmatprep.subr.mxu0 0.0
    %1381 = vmatpush2.msra.mxu0 0.0
    %1382 = vmatprep.subr.mxu0 0.0
    %1383 = vmatpush2.msra.mxu0 0.0
    %1384 = vmatprep.subr.mxu0 0.0
    %1385 = vmatpush2.msra.mxu0 0.0
    %1386 = vmatprep.subr.mxu0 0.0
    %1387 = vmatpush2.msra.mxu0 0.0
    %1388 = vmatprep.subr.mxu0 0.0
    %1389 = vmatpush2.msra.mxu0 0.0
    %1390 = vmatprep.subr.mxu0 0.0
    %1391 = vmatpush2.msra.mxu0 0.0
    %1392 = vmatprep.subr.mxu0 0.0
    %1393 = vmatpush2.msra.mxu0 0.0
    %1394 = vmatprep.subr.mxu0 0.0
    %1395 = vmatpush2.msra.mxu0 0.0
    %1396 = vmatprep.subr.mxu0 0.0
    %1397 = vmatpush2.msra.mxu0 0.0
    %1398 = vmatprep.subr.mxu0 0.0
    %1399 = vmatpush2.msra.mxu0 0.0
    %1400 = vmatprep.subr.mxu0 0.0
    %1401 = vmatpush2.msra.mxu0 0.0
    %1402 = vmatprep.subr.mxu0 0.0
    %1403 = vmatpush2.msra.mxu0 0.0
    %1404 = vmatprep.subr.mxu0 0.0
    %1405 = vmatpush2.msra.mxu0 0.0
    %1406 = vmatprep.subr.mxu0 0.0
    %1407 = vmatpush2.msra.mxu0 0.0
    %1408 = vmatprep.subr.mxu0 0.0
    %1409 = vmatpush2.msra.mxu0 0.0
    %1410 = vmatprep.mubr.f32.mxu0 0.0
    %1411 = vmatmul.mubr.f32.gmra.mxu0 %v1232
    %v1412 = vpop.f32.mrf.mxu0
    %v1413 = vadd.f32 0.0, %v1412
    %v1414 = vpop.f32.mrf.mxu0
    %1415 = vmatprep.mubr.f32.mxu0 0.0
    %1416 = vmatmul.mubr.f32.gmra.mxu0 %v1235
    %v1417 = vpop.f32.mrf.mxu0
    %v1418 = vadd.f32 0.0, %v1417
    %v1419 = vpop.f32.mrf.mxu0
    %1420 = vmatprep.mubr.f32.mxu0 0.0
    %1421 = vmatmul.mubr.f32.gmra.mxu0 %v1238
    %v1422 = vpop.f32.mrf.mxu0
    %v1423 = vadd.f32 0.0, %v1422
    %v1424 = vpop.f32.mrf.mxu0
    %1425 = vmatprep.mubr.f32.mxu0 0.0
    %1426 = vmatmul.mubr.f32.gmra.mxu0 %v1241
    %v1427 = vpop.f32.mrf.mxu0
    %v1428 = vadd.f32 0.0, %v1427
    %v1429 = vpop.f32.mrf.mxu0
    %1430 = vdwg.mxu0
    %v1431 = vrot.slane %v1310, 7
    %v1432 = vrot.slane %v1315, 7
    %v1433 = vrot.slane %v1320, 7
    %v1434 = vrot.slane %v1325, 7
    %v1435 = vsel %vm886, %v1433, %v1434
    %v1436 = vsel %vm886, %v1432, %v1433
    %v1437 = vsel %vm886, %v1431, %v1432
    %v1438 = vsel %vm886, %v1434, %v1431
    %v1439 = vmul.f32 %v1438, %v894
    %v1440 = vmul.f32 %v1437, %v899
    %v1441 = vmul.f32 %v1436, %v904
    %v1442 = vmul.f32 %v1435, %v909
    %1443 = vmatprep.subr.mxu0 0.0
    %1444 = vmatpush1.msra.mxu0 0.0
    %1445 = vmatprep.subr.mxu0 0.0
    %1446 = vmatpush1.msra.mxu0 0.0
    %1447 = vmatprep.subr.mxu0 0.0
    %1448 = vmatpush1.msra.mxu0 0.0
    %1449 = vmatprep.subr.mxu0 0.0
    %1450 = vmatpush1.msra.mxu0 0.0
    %1451 = vmatprep.subr.mxu0 0.0
    %1452 = vmatpush1.msra.mxu0 0.0
    %1453 = vmatprep.subr.mxu0 0.0
    %1454 = vmatpush1.msra.mxu0 0.0
    %1455 = vmatprep.subr.mxu0 0.0
    %1456 = vmatpush1.msra.mxu0 0.0
    %1457 = vmatprep.subr.mxu0 0.0
    %1458 = vmatpush1.msra.mxu0 0.0
    %1459 = vmatprep.subr.mxu0 0.0
    %1460 = vmatpush1.msra.mxu0 %v1336
    %1461 = vmatprep.subr.mxu0 0.0
    %1462 = vmatpush1.msra.mxu0 %v1335
    %1463 = vmatprep.subr.mxu0 0.0
    %1464 = vmatpush1.msra.mxu0 %v1334
    %1465 = vmatprep.subr.mxu0 0.0
    %1466 = vmatpush1.msra.mxu0 %v1333
    %1467 = vmatprep.subr.mxu0 0.0
    %1468 = vmatpush1.msra.mxu0 %v1332
    %1469 = vmatprep.subr.mxu0 0.0
    %1470 = vmatpush1.msra.mxu0 %v1331
    %1471 = vmatprep.subr.mxu0 0.0
    %1472 = vmatpush1.msra.mxu0 %v1330
    %1473 = vmatprep.subr.mxu0 0.0
    %1474 = vmatpush1.msra.mxu0 %v1329
    %1475 = vmatprep.subr.mxu0 0.0
    %1476 = vmatpush2.msra.mxu0 0.0
    %1477 = vmatprep.subr.mxu0 0.0
    %1478 = vmatpush2.msra.mxu0 0.0
    %1479 = vmatprep.subr.mxu0 0.0
    %1480 = vmatpush2.msra.mxu0 0.0
    %1481 = vmatprep.subr.mxu0 0.0
    %1482 = vmatpush2.msra.mxu0 0.0
    %1483 = vmatprep.subr.mxu0 0.0
    %1484 = vmatpush2.msra.mxu0 0.0
    %1485 = vmatprep.subr.mxu0 0.0
    %1486 = vmatpush2.msra.mxu0 0.0
    %1487 = vmatprep.subr.mxu0 0.0
    %1488 = vmatpush2.msra.mxu0 0.0
    %1489 = vmatprep.subr.mxu0 0.0
    %1490 = vmatpush2.msra.mxu0 0.0
    %1491 = vmatprep.subr.mxu0 0.0
    %1492 = vmatpush2.msra.mxu0 0.0
    %1493 = vmatprep.subr.mxu0 0.0
    %1494 = vmatpush2.msra.mxu0 0.0
    %1495 = vmatprep.subr.mxu0 0.0
    %1496 = vmatpush2.msra.mxu0 0.0
    %1497 = vmatprep.subr.mxu0 0.0
    %1498 = vmatpush2.msra.mxu0 0.0
    %1499 = vmatprep.subr.mxu0 0.0
    %1500 = vmatpush2.msra.mxu0 0.0
    %1501 = vmatprep.subr.mxu0 0.0
    %1502 = vmatpush2.msra.mxu0 0.0
    %1503 = vmatprep.subr.mxu0 0.0
    %1504 = vmatpush2.msra.mxu0 0.0
    %1505 = vmatprep.subr.mxu0 0.0
    %1506 = vmatpush2.msra.mxu0 0.0
    %1507 = vmatprep.mubr.f32.mxu0 0.0
    %1508 = vmatmul.mubr.f32.gmra.mxu0 %v1232
    %v1509 = vpop.f32.mrf.mxu0
    %v1510 = vadd.f32 %v1439, %v1509
    %v1511 = vpop.f32.mrf.mxu0
    %1512 = vmatprep.mubr.f32.mxu0 0.0
    %1513 = vmatmul.mubr.f32.gmra.mxu0 %v1235
    %v1514 = vpop.f32.mrf.mxu0
    %v1515 = vadd.f32 %v1440, %v1514
    %v1516 = vpop.f32.mrf.mxu0
    %1517 = vmatprep.mubr.f32.mxu0 0.0
    %1518 = vmatmul.mubr.f32.gmra.mxu0 %v1238
    %v1519 = vpop.f32.mrf.mxu0
    %v1520 = vadd.f32 %v1441, %v1519
    %v1521 = vpop.f32.mrf.mxu0
    %1522 = vmatprep.mubr.f32.mxu0 0.0
    %1523 = vmatmul.mubr.f32.gmra.mxu0 %v1241
    %v1524 = vpop.f32.mrf.mxu0
    %v1525 = vadd.f32 %v1442, %v1524
    %v1526 = vpop.f32.mrf.mxu0
    %1527 = vdwg.mxu0
    %v1528 = vrot.slane %v1413, 1
    %v1529 = vrot.slane %v1418, 1
    %v1530 = vrot.slane %v1423, 1
    %v1531 = vrot.slane %v1428, 1
    %v1532 = vsel %vm1174, %v1530, %v1531
    %v1533 = vsel %vm1174, %v1529, %v1530
    %v1534 = vsel %vm1174, %v1528, %v1529
    %v1535 = vsel %vm1174, %v1531, %v1528
    %v1536 = vmul.f32 %v1534, %v1182
    %v1537 = vmul.f32 %v1533, %v1187
    %v1538 = vmul.f32 %v1532, %v1192
    %v1539 = vmul.f32 %v1535, %v1197
    %v1540 = vadd.f32 %v1510, %v1536
    %v1541 = vadd.f32 %v1515, %v1537
    %v1542 = vadd.f32 %v1520, %v1538
    %v1543 = vadd.f32 %v1525, %v1539
    %v1544 = vld [vmem:[%s7] sm:$0x1]
    %v1546 = vlaneseq
    %v1547 = vshrl.u32 %v1546, 7
    %v1548 = vsub.s32 0, %v1547
    %v1549 = vrot.slane %v1544, %v1548
    %v1551 = vadd.f32 %v1540, %v1549
    %v1552 = vadd.f32 %v1541, %v1549
    %v1553 = vadd.f32 %v1542, %v1549
    %v1554 = vadd.f32 %v1543, %v1549
    %v1555 = vmax.f32 %v1551, 0.0
    %v1556 = vmax.f32 %v1552, 0.0
    %v1557 = vmax.f32 %v1553, 0.0
    %v1558 = vmax.f32 %v1554, 0.0
    %v1559 = vld [vmem:[%s8] sm:$0xff]
    %v1560 = vld [vmem:[%s8 + $0x8] sm:$0xff]
    %v1561 = vld [vmem:[%s8 + $0x10] sm:$0xff]
    %v1562 = vld [vmem:[%s8 + $0x18] sm:$0xff]
    %v1563 = vld [vmem:[%s8 + $0x20] sm:$0xff]
    %v1564 = vld [vmem:[%s8 + $0x28] sm:$0xff]
    %v1565 = vld [vmem:[%s8 + $0x30] sm:$0xff]
    %v1566 = vld [vmem:[%s8 + $0x38] sm:$0xff]
    %v1567 = vld [vmem:[%s8 + $0x40] sm:$0xff]
    %v1568 = vld [vmem:[%s8 + $0x48] sm:$0xff]
    %v1569 = vld [vmem:[%s8 + $0x50] sm:$0xff]
    %v1570 = vld [vmem:[%s8 + $0x58] sm:$0xff]
    %v1571 = vld [vmem:[%s8 + $0x60] sm:$0xff]
    %v1572 = vld [vmem:[%s8 + $0x68] sm:$0xff]
    %v1573 = vld [vmem:[%s8 + $0x70] sm:$0xff]
    %v1574 = vld [vmem:[%s8 + $0x78] sm:$0xff]
    %1575 = vmatprep.subr.mxu0 0.0
    %1576 = vmatpush1.msra.mxu0 %v1574
    %1577 = vmatprep.subr.mxu0 0.0
    %1578 = vmatpush1.msra.mxu0 %v1573
    %1579 = vmatprep.subr.mxu0 0.0
    %1580 = vmatpush1.msra.mxu0 %v1572
    %1581 = vmatprep.subr.mxu0 0.0
    %1582 = vmatpush1.msra.mxu0 %v1571
    %1583 = vmatprep.subr.mxu0 0.0
    %1584 = vmatpush1.msra.mxu0 %v1570
    %1585 = vmatprep.subr.mxu0 0.0
    %1586 = vmatpush1.msra.mxu0 %v1569
    %1587 = vmatprep.subr.mxu0 0.0
    %1588 = vmatpush1.msra.mxu0 %v1568
    %1589 = vmatprep.subr.mxu0 0.0
    %1590 = vmatpush1.msra.mxu0 %v1567
    %1591 = vmatprep.subr.mxu0 0.0
    %1592 = vmatpush1.msra.mxu0 %v1566
    %1593 = vmatprep.subr.mxu0 0.0
    %1594 = vmatpush1.msra.mxu0 %v1565
    %1595 = vmatprep.subr.mxu0 0.0
    %1596 = vmatpush1.msra.mxu0 %v1564
    %1597 = vmatprep.subr.mxu0 0.0
    %1598 = vmatpush1.msra.mxu0 %v1563
    %1599 = vmatprep.subr.mxu0 0.0
    %1600 = vmatpush1.msra.mxu0 %v1562
    %1601 = vmatprep.subr.mxu0 0.0
    %1602 = vmatpush1.msra.mxu0 %v1561
    %1603 = vmatprep.subr.mxu0 0.0
    %1604 = vmatpush1.msra.mxu0 %v1560
    %1605 = vmatprep.subr.mxu0 0.0
    %1606 = vmatpush1.msra.mxu0 %v1559
    %1607 = vmatprep.subr.mxu0 0.0
    %1608 = vmatpush2.msra.mxu0 0.0
    %1609 = vmatprep.subr.mxu0 0.0
    %1610 = vmatpush2.msra.mxu0 0.0
    %1611 = vmatprep.subr.mxu0 0.0
    %1612 = vmatpush2.msra.mxu0 0.0
    %1613 = vmatprep.subr.mxu0 0.0
    %1614 = vmatpush2.msra.mxu0 0.0
    %1615 = vmatprep.subr.mxu0 0.0
    %1616 = vmatpush2.msra.mxu0 0.0
    %1617 = vmatprep.subr.mxu0 0.0
    %1618 = vmatpush2.msra.mxu0 0.0
    %1619 = vmatprep.subr.mxu0 0.0
    %1620 = vmatpush2.msra.mxu0 0.0
    %1621 = vmatprep.subr.mxu0 0.0
    %1622 = vmatpush2.msra.mxu0 0.0
    %1623 = vmatprep.subr.mxu0 0.0
    %1624 = vmatpush2.msra.mxu0 0.0
    %1625 = vmatprep.subr.mxu0 0.0
    %1626 = vmatpush2.msra.mxu0 0.0
    %1627 = vmatprep.subr.mxu0 0.0
    %1628 = vmatpush2.msra.mxu0 0.0
    %1629 = vmatprep.subr.mxu0 0.0
    %1630 = vmatpush2.msra.mxu0 0.0
    %1631 = vmatprep.subr.mxu0 0.0
    %1632 = vmatpush2.msra.mxu0 0.0
    %1633 = vmatprep.subr.mxu0 0.0
    %1634 = vmatpush2.msra.mxu0 0.0
    %1635 = vmatprep.subr.mxu0 0.0
    %1636 = vmatpush2.msra.mxu0 0.0
    %1637 = vmatprep.subr.mxu0 0.0
    %1638 = vmatpush2.msra.mxu0 0.0
    %1639 = vmatprep.mubr.f32.mxu0 0.0
    %1640 = vmatmul.mubr.f32.gmra.mxu0 %v1555
    %v1641 = vpop.f32.mrf.mxu0
    %v1642 = vadd.f32 0.0, %v1641
    %v1643 = vpop.f32.mrf.mxu0
    %1644 = vmatprep.mubr.f32.mxu0 0.0
    %1645 = vmatmul.mubr.f32.gmra.mxu0 %v1556
    %v1646 = vpop.f32.mrf.mxu0
    %v1647 = vadd.f32 0.0, %v1646
    %v1648 = vpop.f32.mrf.mxu0
    %1649 = vmatprep.mubr.f32.mxu0 0.0
    %1650 = vmatmul.mubr.f32.gmra.mxu0 %v1557
    %v1651 = vpop.f32.mrf.mxu0
    %v1652 = vadd.f32 0.0, %v1651
    %v1653 = vpop.f32.mrf.mxu0
    %1654 = vmatprep.mubr.f32.mxu0 0.0
    %1655 = vmatmul.mubr.f32.gmra.mxu0 %v1558
    %v1656 = vpop.f32.mrf.mxu0
    %v1657 = vadd.f32 0.0, %v1656
    %v1658 = vpop.f32.mrf.mxu0
    %1659 = vdwg.mxu0
    %s1660 = scalar_lea.vmem %s8, 128
    %v1661 = vld [vmem:[%s1660] sm:$0xff]
    %v1662 = vld [vmem:[%s1660 + $0x8] sm:$0xff]
    %v1663 = vld [vmem:[%s1660 + $0x10] sm:$0xff]
    %v1664 = vld [vmem:[%s1660 + $0x18] sm:$0xff]
    %v1665 = vld [vmem:[%s1660 + $0x20] sm:$0xff]
    %v1666 = vld [vmem:[%s1660 + $0x28] sm:$0xff]
    %v1667 = vld [vmem:[%s1660 + $0x30] sm:$0xff]
    %v1668 = vld [vmem:[%s1660 + $0x38] sm:$0xff]
    %v1669 = vld [vmem:[%s1660 + $0x40] sm:$0xff]
    %v1670 = vld [vmem:[%s1660 + $0x48] sm:$0xff]
    %v1671 = vld [vmem:[%s1660 + $0x50] sm:$0xff]
    %v1672 = vld [vmem:[%s1660 + $0x58] sm:$0xff]
    %v1673 = vld [vmem:[%s1660 + $0x60] sm:$0xff]
    %v1674 = vld [vmem:[%s1660 + $0x68] sm:$0xff]
    %v1675 = vld [vmem:[%s1660 + $0x70] sm:$0xff]
    %v1676 = vld [vmem:[%s1660 + $0x78] sm:$0xff]
    %s1677 = scalar_lea.vmem %s8, 256
    %v1678 = vld [vmem:[%s1677] sm:$0xff]
    %v1679 = vld [vmem:[%s1677 + $0x8] sm:$0xff]
    %v1680 = vld [vmem:[%s1677 + $0x10] sm:$0xff]
    %v1681 = vld [vmem:[%s1677 + $0x18] sm:$0xff]
    %v1682 = vld [vmem:[%s1677 + $0x20] sm:$0xff]
    %v1683 = vld [vmem:[%s1677 + $0x28] sm:$0xff]
    %v1684 = vld [vmem:[%s1677 + $0x30] sm:$0xff]
    %v1685 = vld [vmem:[%s1677 + $0x38] sm:$0xff]
    %v1686 = vld [vmem:[%s1677 + $0x40] sm:$0xff]
    %v1687 = vld [vmem:[%s1677 + $0x48] sm:$0xff]
    %v1688 = vld [vmem:[%s1677 + $0x50] sm:$0xff]
    %v1689 = vld [vmem:[%s1677 + $0x58] sm:$0xff]
    %v1690 = vld [vmem:[%s1677 + $0x60] sm:$0xff]
    %v1691 = vld [vmem:[%s1677 + $0x68] sm:$0xff]
    %v1692 = vld [vmem:[%s1677 + $0x70] sm:$0xff]
    %v1693 = vld [vmem:[%s1677 + $0x78] sm:$0xff]
    %1694 = vmatprep.subr.mxu0 0.0
    %1695 = vmatpush1.msra.mxu0 %v1693
    %1696 = vmatprep.subr.mxu0 0.0
    %1697 = vmatpush1.msra.mxu0 %v1692
    %1698 = vmatprep.subr.mxu0 0.0
    %1699 = vmatpush1.msra.mxu0 %v1691
    %1700 = vmatprep.subr.mxu0 0.0
    %1701 = vmatpush1.msra.mxu0 %v1690
    %1702 = vmatprep.subr.mxu0 0.0
    %1703 = vmatpush1.msra.mxu0 %v1689
    %1704 = vmatprep.subr.mxu0 0.0
    %1705 = vmatpush1.msra.mxu0 %v1688
    %1706 = vmatprep.subr.mxu0 0.0
    %1707 = vmatpush1.msra.mxu0 %v1687
    %1708 = vmatprep.subr.mxu0 0.0
    %1709 = vmatpush1.msra.mxu0 %v1686
    %1710 = vmatprep.subr.mxu0 0.0
    %1711 = vmatpush1.msra.mxu0 %v1685
    %1712 = vmatprep.subr.mxu0 0.0
    %1713 = vmatpush1.msra.mxu0 %v1684
    %1714 = vmatprep.subr.mxu0 0.0
    %1715 = vmatpush1.msra.mxu0 %v1683
    %1716 = vmatprep.subr.mxu0 0.0
    %1717 = vmatpush1.msra.mxu0 %v1682
    %1718 = vmatprep.subr.mxu0 0.0
    %1719 = vmatpush1.msra.mxu0 %v1681
    %1720 = vmatprep.subr.mxu0 0.0
    %1721 = vmatpush1.msra.mxu0 %v1680
    %1722 = vmatprep.subr.mxu0 0.0
    %1723 = vmatpush1.msra.mxu0 %v1679
    %1724 = vmatprep.subr.mxu0 0.0
    %1725 = vmatpush1.msra.mxu0 %v1678
    %1726 = vmatprep.subr.mxu0 0.0
    %1727 = vmatpush2.msra.mxu0 0.0
    %1728 = vmatprep.subr.mxu0 0.0
    %1729 = vmatpush2.msra.mxu0 0.0
    %1730 = vmatprep.subr.mxu0 0.0
    %1731 = vmatpush2.msra.mxu0 0.0
    %1732 = vmatprep.subr.mxu0 0.0
    %1733 = vmatpush2.msra.mxu0 0.0
    %1734 = vmatprep.subr.mxu0 0.0
    %1735 = vmatpush2.msra.mxu0 0.0
    %1736 = vmatprep.subr.mxu0 0.0
    %1737 = vmatpush2.msra.mxu0 0.0
    %1738 = vmatprep.subr.mxu0 0.0
    %1739 = vmatpush2.msra.mxu0 0.0
    %1740 = vmatprep.subr.mxu0 0.0
    %1741 = vmatpush2.msra.mxu0 0.0
    %1742 = vmatprep.subr.mxu0 0.0
    %1743 = vmatpush2.msra.mxu0 0.0
    %1744 = vmatprep.subr.mxu0 0.0
    %1745 = vmatpush2.msra.mxu0 0.0
    %1746 = vmatprep.subr.mxu0 0.0
    %1747 = vmatpush2.msra.mxu0 0.0
    %1748 = vmatprep.subr.mxu0 0.0
    %1749 = vmatpush2.msra.mxu0 0.0
    %1750 = vmatprep.subr.mxu0 0.0
    %1751 = vmatpush2.msra.mxu0 0.0
    %1752 = vmatprep.subr.mxu0 0.0
    %1753 = vmatpush2.msra.mxu0 0.0
    %1754 = vmatprep.subr.mxu0 0.0
    %1755 = vmatpush2.msra.mxu0 0.0
    %1756 = vmatprep.subr.mxu0 0.0
    %1757 = vmatpush2.msra.mxu0 0.0
    %1758 = vmatprep.mubr.f32.mxu0 0.0
    %1759 = vmatmul.mubr.f32.gmra.mxu0 %v1555
    %v1760 = vpop.f32.mrf.mxu0
    %v1761 = vadd.f32 0.0, %v1760
    %v1762 = vpop.f32.mrf.mxu0
    %1763 = vmatprep.mubr.f32.mxu0 0.0
    %1764 = vmatmul.mubr.f32.gmra.mxu0 %v1556
    %v1765 = vpop.f32.mrf.mxu0
    %v1766 = vadd.f32 0.0, %v1765
    %v1767 = vpop.f32.mrf.mxu0
    %1768 = vmatprep.mubr.f32.mxu0 0.0
    %1769 = vmatmul.mubr.f32.gmra.mxu0 %v1557
    %v1770 = vpop.f32.mrf.mxu0
    %v1771 = vadd.f32 0.0, %v1770
    %v1772 = vpop.f32.mrf.mxu0
    %1773 = vmatprep.mubr.f32.mxu0 0.0
    %1774 = vmatmul.mubr.f32.gmra.mxu0 %v1558
    %v1775 = vpop.f32.mrf.mxu0
    %v1776 = vadd.f32 0.0, %v1775
    %v1777 = vpop.f32.mrf.mxu0
    %1778 = vdwg.mxu0
    %v1779 = vrot.slane %v1642, 7
    %v1780 = vrot.slane %v1647, 7
    %v1781 = vrot.slane %v1652, 7
    %v1782 = vrot.slane %v1657, 7
    %v1783 = vsel %vm886, %v1781, %v1782
    %v1784 = vsel %vm886, %v1780, %v1781
    %v1785 = vsel %vm886, %v1779, %v1780
    %v1786 = vsel %vm886, %v1782, %v1779
    %v1787 = vmul.f32 %v1786, %v894
    %v1788 = vmul.f32 %v1785, %v899
    %v1789 = vmul.f32 %v1784, %v904
    %v1790 = vmul.f32 %v1783, %v909
    %1791 = vmatprep.subr.mxu0 0.0
    %1792 = vmatpush1.msra.mxu0 %v1676
    %1793 = vmatprep.subr.mxu0 0.0
    %1794 = vmatpush1.msra.mxu0 %v1675
    %1795 = vmatprep.subr.mxu0 0.0
    %1796 = vmatpush1.msra.mxu0 %v1674
    %1797 = vmatprep.subr.mxu0 0.0
    %1798 = vmatpush1.msra.mxu0 %v1673
    %1799 = vmatprep.subr.mxu0 0.0
    %1800 = vmatpush1.msra.mxu0 %v1672
    %1801 = vmatprep.subr.mxu0 0.0
    %1802 = vmatpush1.msra.mxu0 %v1671
    %1803 = vmatprep.subr.mxu0 0.0
    %1804 = vmatpush1.msra.mxu0 %v1670
    %1805 = vmatprep.subr.mxu0 0.0
    %1806 = vmatpush1.msra.mxu0 %v1669
    %1807 = vmatprep.subr.mxu0 0.0
    %1808 = vmatpush1.msra.mxu0 %v1668
    %1809 = vmatprep.subr.mxu0 0.0
    %1810 = vmatpush1.msra.mxu0 %v1667
    %1811 = vmatprep.subr.mxu0 0.0
    %1812 = vmatpush1.msra.mxu0 %v1666
    %1813 = vmatprep.subr.mxu0 0.0
    %1814 = vmatpush1.msra.mxu0 %v1665
    %1815 = vmatprep.subr.mxu0 0.0
    %1816 = vmatpush1.msra.mxu0 %v1664
    %1817 = vmatprep.subr.mxu0 0.0
    %1818 = vmatpush1.msra.mxu0 %v1663
    %1819 = vmatprep.subr.mxu0 0.0
    %1820 = vmatpush1.msra.mxu0 %v1662
    %1821 = vmatprep.subr.mxu0 0.0
    %1822 = vmatpush1.msra.mxu0 %v1661
    %1823 = vmatprep.subr.mxu0 0.0
    %1824 = vmatpush2.msra.mxu0 0.0
    %1825 = vmatprep.subr.mxu0 0.0
    %1826 = vmatpush2.msra.mxu0 0.0
    %1827 = vmatprep.subr.mxu0 0.0
    %1828 = vmatpush2.msra.mxu0 0.0
    %1829 = vmatprep.subr.mxu0 0.0
    %1830 = vmatpush2.msra.mxu0 0.0
    %1831 = vmatprep.subr.mxu0 0.0
    %1832 = vmatpush2.msra.mxu0 0.0
    %1833 = vmatprep.subr.mxu0 0.0
    %1834 = vmatpush2.msra.mxu0 0.0
    %1835 = vmatprep.subr.mxu0 0.0
    %1836 = vmatpush2.msra.mxu0 0.0
    %1837 = vmatprep.subr.mxu0 0.0
    %1838 = vmatpush2.msra.mxu0 0.0
    %1839 = vmatprep.subr.mxu0 0.0
    %1840 = vmatpush2.msra.mxu0 0.0
    %1841 = vmatprep.subr.mxu0 0.0
    %1842 = vmatpush2.msra.mxu0 0.0
    %1843 = vmatprep.subr.mxu0 0.0
    %1844 = vmatpush2.msra.mxu0 0.0
    %1845 = vmatprep.subr.mxu0 0.0
    %1846 = vmatpush2.msra.mxu0 0.0
    %1847 = vmatprep.subr.mxu0 0.0
    %1848 = vmatpush2.msra.mxu0 0.0
    %1849 = vmatprep.subr.mxu0 0.0
    %1850 = vmatpush2.msra.mxu0 0.0
    %1851 = vmatprep.subr.mxu0 0.0
    %1852 = vmatpush2.msra.mxu0 0.0
    %1853 = vmatprep.subr.mxu0 0.0
    %1854 = vmatpush2.msra.mxu0 0.0
    %1855 = vmatprep.mubr.f32.mxu0 0.0
    %1856 = vmatmul.mubr.f32.gmra.mxu0 %v1555
    %v1857 = vpop.f32.mrf.mxu0
    %v1858 = vadd.f32 %v1787, %v1857
    %v1859 = vpop.f32.mrf.mxu0
    %1860 = vmatprep.mubr.f32.mxu0 0.0
    %1861 = vmatmul.mubr.f32.gmra.mxu0 %v1556
    %v1862 = vpop.f32.mrf.mxu0
    %v1863 = vadd.f32 %v1788, %v1862
    %v1864 = vpop.f32.mrf.mxu0
    %1865 = vmatprep.mubr.f32.mxu0 0.0
    %1866 = vmatmul.mubr.f32.gmra.mxu0 %v1557
    %v1867 = vpop.f32.mrf.mxu0
    %v1868 = vadd.f32 %v1789, %v1867
    %v1869 = vpop.f32.mrf.mxu0
    %1870 = vmatprep.mubr.f32.mxu0 0.0
    %1871 = vmatmul.mubr.f32.gmra.mxu0 %v1558
    %v1872 = vpop.f32.mrf.mxu0
    %v1873 = vadd.f32 %v1790, %v1872
    %v1874 = vpop.f32.mrf.mxu0
    %1875 = vdwg.mxu0
    %v1876 = vrot.slane %v1761, 1
    %v1877 = vrot.slane %v1766, 1
    %v1878 = vrot.slane %v1771, 1
    %v1879 = vrot.slane %v1776, 1
    %v1880 = vsel %vm1174, %v1878, %v1879
    %v1881 = vsel %vm1174, %v1877, %v1878
    %v1882 = vsel %vm1174, %v1876, %v1877
    %v1883 = vsel %vm1174, %v1879, %v1876
    %v1884 = vmul.f32 %v1882, %v1182
    %v1885 = vmul.f32 %v1881, %v1187
    %v1886 = vmul.f32 %v1880, %v1192
    %v1887 = vmul.f32 %v1883, %v1197
    %v1888 = vadd.f32 %v1858, %v1884
    %v1889 = vadd.f32 %v1863, %v1885
    %v1890 = vadd.f32 %v1868, %v1886
    %v1891 = vadd.f32 %v1873, %v1887
    %v1892 = vld [vmem:[%s9] sm:$0x1]
    %v1894 = vlaneseq
    %v1895 = vshrl.u32 %v1894, 7
    %v1896 = vsub.s32 0, %v1895
    %v1897 = vrot.slane %v1892, %v1896
    %v1899 = vadd.f32 %v1888, %v1897
    %v1900 = vadd.f32 %v1889, %v1897
    %v1901 = vadd.f32 %v1890, %v1897
    %v1902 = vadd.f32 %v1891, %v1897
    %v1903 = vmax.f32 %v1899, 0.0
    %v1904 = vmax.f32 %v1900, 0.0
    %v1905 = vmax.f32 %v1901, 0.0
    %v1906 = vmax.f32 %v1902, 0.0
    %v1907 = vld [vmem:[%s10] sm:$0xff]
    %v1908 = vld [vmem:[%s10 + $0x8] sm:$0xff]
    %v1909 = vld [vmem:[%s10 + $0x10] sm:$0xff]
    %v1910 = vld [vmem:[%s10 + $0x18] sm:$0xff]
    %v1911 = vld [vmem:[%s10 + $0x20] sm:$0xff]
    %v1912 = vld [vmem:[%s10 + $0x28] sm:$0xff]
    %v1913 = vld [vmem:[%s10 + $0x30] sm:$0xff]
    %v1914 = vld [vmem:[%s10 + $0x38] sm:$0xff]
    %v1915 = vld [vmem:[%s10 + $0x40] sm:$0xff]
    %v1916 = vld [vmem:[%s10 + $0x48] sm:$0xff]
    %v1917 = vld [vmem:[%s10 + $0x50] sm:$0xff]
    %v1918 = vld [vmem:[%s10 + $0x58] sm:$0xff]
    %v1919 = vld [vmem:[%s10 + $0x60] sm:$0xff]
    %v1920 = vld [vmem:[%s10 + $0x68] sm:$0xff]
    %v1921 = vld [vmem:[%s10 + $0x70] sm:$0xff]
    %v1922 = vld [vmem:[%s10 + $0x78] sm:$0xff]
    %1923 = vmatprep.subr.mxu0 0.0
    %1924 = vmatpush1.msra.mxu0 %v1922
    %1925 = vmatprep.subr.mxu0 0.0
    %1926 = vmatpush1.msra.mxu0 %v1921
    %1927 = vmatprep.subr.mxu0 0.0
    %1928 = vmatpush1.msra.mxu0 %v1920
    %1929 = vmatprep.subr.mxu0 0.0
    %1930 = vmatpush1.msra.mxu0 %v1919
    %1931 = vmatprep.subr.mxu0 0.0
    %1932 = vmatpush1.msra.mxu0 %v1918
    %1933 = vmatprep.subr.mxu0 0.0
    %1934 = vmatpush1.msra.mxu0 %v1917
    %1935 = vmatprep.subr.mxu0 0.0
    %1936 = vmatpush1.msra.mxu0 %v1916
    %1937 = vmatprep.subr.mxu0 0.0
    %1938 = vmatpush1.msra.mxu0 %v1915
    %1939 = vmatprep.subr.mxu0 0.0
    %1940 = vmatpush1.msra.mxu0 %v1914
    %1941 = vmatprep.subr.mxu0 0.0
    %1942 = vmatpush1.msra.mxu0 %v1913
    %1943 = vmatprep.subr.mxu0 0.0
    %1944 = vmatpush1.msra.mxu0 %v1912
    %1945 = vmatprep.subr.mxu0 0.0
    %1946 = vmatpush1.msra.mxu0 %v1911
    %1947 = vmatprep.subr.mxu0 0.0
    %1948 = vmatpush1.msra.mxu0 %v1910
    %1949 = vmatprep.subr.mxu0 0.0
    %1950 = vmatpush1.msra.mxu0 %v1909
    %1951 = vmatprep.subr.mxu0 0.0
    %1952 = vmatpush1.msra.mxu0 %v1908
    %1953 = vmatprep.subr.mxu0 0.0
    %1954 = vmatpush1.msra.mxu0 %v1907
    %1955 = vmatprep.subr.mxu0 0.0
    %1956 = vmatpush2.msra.mxu0 0.0
    %1957 = vmatprep.subr.mxu0 0.0
    %1958 = vmatpush2.msra.mxu0 0.0
    %1959 = vmatprep.subr.mxu0 0.0
    %1960 = vmatpush2.msra.mxu0 0.0
    %1961 = vmatprep.subr.mxu0 0.0
    %1962 = vmatpush2.msra.mxu0 0.0
    %1963 = vmatprep.subr.mxu0 0.0
    %1964 = vmatpush2.msra.mxu0 0.0
    %1965 = vmatprep.subr.mxu0 0.0
    %1966 = vmatpush2.msra.mxu0 0.0
    %1967 = vmatprep.subr.mxu0 0.0
    %1968 = vmatpush2.msra.mxu0 0.0
    %1969 = vmatprep.subr.mxu0 0.0
    %1970 = vmatpush2.msra.mxu0 0.0
    %1971 = vmatprep.subr.mxu0 0.0
    %1972 = vmatpush2.msra.mxu0 0.0
    %1973 = vmatprep.subr.mxu0 0.0
    %1974 = vmatpush2.msra.mxu0 0.0
    %1975 = vmatprep.subr.mxu0 0.0
    %1976 = vmatpush2.msra.mxu0 0.0
    %1977 = vmatprep.subr.mxu0 0.0
    %1978 = vmatpush2.msra.mxu0 0.0
    %1979 = vmatprep.subr.mxu0 0.0
    %1980 = vmatpush2.msra.mxu0 0.0
    %1981 = vmatprep.subr.mxu0 0.0
    %1982 = vmatpush2.msra.mxu0 0.0
    %1983 = vmatprep.subr.mxu0 0.0
    %1984 = vmatpush2.msra.mxu0 0.0
    %1985 = vmatprep.subr.mxu0 0.0
    %1986 = vmatpush2.msra.mxu0 0.0
    %1987 = vmatprep.mubr.f32.mxu0 0.0
    %1988 = vmatmul.mubr.f32.gmra.mxu0 %v1903
    %v1989 = vpop.f32.mrf.mxu0
    %v1990 = vadd.f32 0.0, %v1989
    %v1991 = vpop.f32.mrf.mxu0
    %1992 = vmatprep.mubr.f32.mxu0 0.0
    %1993 = vmatmul.mubr.f32.gmra.mxu0 %v1904
    %v1994 = vpop.f32.mrf.mxu0
    %v1995 = vadd.f32 0.0, %v1994
    %v1996 = vpop.f32.mrf.mxu0
    %1997 = vmatprep.mubr.f32.mxu0 0.0
    %1998 = vmatmul.mubr.f32.gmra.mxu0 %v1905
    %v1999 = vpop.f32.mrf.mxu0
    %v2000 = vadd.f32 0.0, %v1999
    %v2001 = vpop.f32.mrf.mxu0
    %2002 = vmatprep.mubr.f32.mxu0 0.0
    %2003 = vmatmul.mubr.f32.gmra.mxu0 %v1906
    %v2004 = vpop.f32.mrf.mxu0
    %v2005 = vadd.f32 0.0, %v2004
    %v2006 = vpop.f32.mrf.mxu0
    %2007 = vdwg.mxu0
    %s2008 = scalar_lea.vmem %s10, 128
    %v2009 = vld [vmem:[%s2008] sm:$0xff]
    %v2010 = vld [vmem:[%s2008 + $0x8] sm:$0xff]
    %v2011 = vld [vmem:[%s2008 + $0x10] sm:$0xff]
    %v2012 = vld [vmem:[%s2008 + $0x18] sm:$0xff]
    %v2013 = vld [vmem:[%s2008 + $0x20] sm:$0xff]
    %v2014 = vld [vmem:[%s2008 + $0x28] sm:$0xff]
    %v2015 = vld [vmem:[%s2008 + $0x30] sm:$0xff]
    %v2016 = vld [vmem:[%s2008 + $0x38] sm:$0xff]
    %v2017 = vld [vmem:[%s2008 + $0x40] sm:$0xff]
    %v2018 = vld [vmem:[%s2008 + $0x48] sm:$0xff]
    %v2019 = vld [vmem:[%s2008 + $0x50] sm:$0xff]
    %v2020 = vld [vmem:[%s2008 + $0x58] sm:$0xff]
    %v2021 = vld [vmem:[%s2008 + $0x60] sm:$0xff]
    %v2022 = vld [vmem:[%s2008 + $0x68] sm:$0xff]
    %v2023 = vld [vmem:[%s2008 + $0x70] sm:$0xff]
    %v2024 = vld [vmem:[%s2008 + $0x78] sm:$0xff]
    %s2025 = scalar_lea.vmem %s10, 256
    %v2026 = vld [vmem:[%s2025] sm:$0xff]
    %v2027 = vld [vmem:[%s2025 + $0x8] sm:$0xff]
    %v2028 = vld [vmem:[%s2025 + $0x10] sm:$0xff]
    %v2029 = vld [vmem:[%s2025 + $0x18] sm:$0xff]
    %v2030 = vld [vmem:[%s2025 + $0x20] sm:$0xff]
    %v2031 = vld [vmem:[%s2025 + $0x28] sm:$0xff]
    %v2032 = vld [vmem:[%s2025 + $0x30] sm:$0xff]
    %v2033 = vld [vmem:[%s2025 + $0x38] sm:$0xff]
    %v2034 = vld [vmem:[%s2025 + $0x40] sm:$0xff]
    %v2035 = vld [vmem:[%s2025 + $0x48] sm:$0xff]
    %v2036 = vld [vmem:[%s2025 + $0x50] sm:$0xff]
    %v2037 = vld [vmem:[%s2025 + $0x58] sm:$0xff]
    %v2038 = vld [vmem:[%s2025 + $0x60] sm:$0xff]
    %v2039 = vld [vmem:[%s2025 + $0x68] sm:$0xff]
    %v2040 = vld [vmem:[%s2025 + $0x70] sm:$0xff]
    %v2041 = vld [vmem:[%s2025 + $0x78] sm:$0xff]
    %2042 = vmatprep.subr.mxu0 0.0
    %2043 = vmatpush1.msra.mxu0 %v2041
    %2044 = vmatprep.subr.mxu0 0.0
    %2045 = vmatpush1.msra.mxu0 %v2040
    %2046 = vmatprep.subr.mxu0 0.0
    %2047 = vmatpush1.msra.mxu0 %v2039
    %2048 = vmatprep.subr.mxu0 0.0
    %2049 = vmatpush1.msra.mxu0 %v2038
    %2050 = vmatprep.subr.mxu0 0.0
    %2051 = vmatpush1.msra.mxu0 %v2037
    %2052 = vmatprep.subr.mxu0 0.0
    %2053 = vmatpush1.msra.mxu0 %v2036
    %2054 = vmatprep.subr.mxu0 0.0
    %2055 = vmatpush1.msra.mxu0 %v2035
    %2056 = vmatprep.subr.mxu0 0.0
    %2057 = vmatpush1.msra.mxu0 %v2034
    %2058 = vmatprep.subr.mxu0 0.0
    %2059 = vmatpush1.msra.mxu0 %v2033
    %2060 = vmatprep.subr.mxu0 0.0
    %2061 = vmatpush1.msra.mxu0 %v2032
    %2062 = vmatprep.subr.mxu0 0.0
    %2063 = vmatpush1.msra.mxu0 %v2031
    %2064 = vmatprep.subr.mxu0 0.0
    %2065 = vmatpush1.msra.mxu0 %v2030
    %2066 = vmatprep.subr.mxu0 0.0
    %2067 = vmatpush1.msra.mxu0 %v2029
    %2068 = vmatprep.subr.mxu0 0.0
    %2069 = vmatpush1.msra.mxu0 %v2028
    %2070 = vmatprep.subr.mxu0 0.0
    %2071 = vmatpush1.msra.mxu0 %v2027
    %2072 = vmatprep.subr.mxu0 0.0
    %2073 = vmatpush1.msra.mxu0 %v2026
    %2074 = vmatprep.subr.mxu0 0.0
    %2075 = vmatpush2.msra.mxu0 0.0
    %2076 = vmatprep.subr.mxu0 0.0
    %2077 = vmatpush2.msra.mxu0 0.0
    %2078 = vmatprep.subr.mxu0 0.0
    %2079 = vmatpush2.msra.mxu0 0.0
    %2080 = vmatprep.subr.mxu0 0.0
    %2081 = vmatpush2.msra.mxu0 0.0
    %2082 = vmatprep.subr.mxu0 0.0
    %2083 = vmatpush2.msra.mxu0 0.0
    %2084 = vmatprep.subr.mxu0 0.0
    %2085 = vmatpush2.msra.mxu0 0.0
    %2086 = vmatprep.subr.mxu0 0.0
    %2087 = vmatpush2.msra.mxu0 0.0
    %2088 = vmatprep.subr.mxu0 0.0
    %2089 = vmatpush2.msra.mxu0 0.0
    %2090 = vmatprep.subr.mxu0 0.0
    %2091 = vmatpush2.msra.mxu0 0.0
    %2092 = vmatprep.subr.mxu0 0.0
    %2093 = vmatpush2.msra.mxu0 0.0
    %2094 = vmatprep.subr.mxu0 0.0
    %2095 = vmatpush2.msra.mxu0 0.0
    %2096 = vmatprep.subr.mxu0 0.0
    %2097 = vmatpush2.msra.mxu0 0.0
    %2098 = vmatprep.subr.mxu0 0.0
    %2099 = vmatpush2.msra.mxu0 0.0
    %2100 = vmatprep.subr.mxu0 0.0
    %2101 = vmatpush2.msra.mxu0 0.0
    %2102 = vmatprep.subr.mxu0 0.0
    %2103 = vmatpush2.msra.mxu0 0.0
    %2104 = vmatprep.subr.mxu0 0.0
    %2105 = vmatpush2.msra.mxu0 0.0
    %2106 = vmatprep.mubr.f32.mxu0 0.0
    %2107 = vmatmul.mubr.f32.gmra.mxu0 %v1903
    %v2108 = vpop.f32.mrf.mxu0
    %v2109 = vadd.f32 0.0, %v2108
    %v2110 = vpop.f32.mrf.mxu0
    %2111 = vmatprep.mubr.f32.mxu0 0.0
    %2112 = vmatmul.mubr.f32.gmra.mxu0 %v1904
    %v2113 = vpop.f32.mrf.mxu0
    %v2114 = vadd.f32 0.0, %v2113
    %v2115 = vpop.f32.mrf.mxu0
    %2116 = vmatprep.mubr.f32.mxu0 0.0
    %2117 = vmatmul.mubr.f32.gmra.mxu0 %v1905
    %v2118 = vpop.f32.mrf.mxu0
    %v2119 = vadd.f32 0.0, %v2118
    %v2120 = vpop.f32.mrf.mxu0
    %2121 = vmatprep.mubr.f32.mxu0 0.0
    %2122 = vmatmul.mubr.f32.gmra.mxu0 %v1906
    %v2123 = vpop.f32.mrf.mxu0
    %v2124 = vadd.f32 0.0, %v2123
    %v2125 = vpop.f32.mrf.mxu0
    %2126 = vdwg.mxu0
    %v2127 = vrot.slane %v1990, 7
    %v2128 = vrot.slane %v1995, 7
    %v2129 = vrot.slane %v2000, 7
    %v2130 = vrot.slane %v2005, 7
    %v2131 = vsel %vm886, %v2129, %v2130
    %v2132 = vsel %vm886, %v2128, %v2129
    %v2133 = vsel %vm886, %v2127, %v2128
    %v2134 = vsel %vm886, %v2130, %v2127
    %v2135 = vmul.f32 %v2134, %v894
    %v2136 = vmul.f32 %v2133, %v899
    %v2137 = vmul.f32 %v2132, %v904
    %v2138 = vmul.f32 %v2131, %v909
    %2139 = vmatprep.subr.mxu0 0.0
    %2140 = vmatpush1.msra.mxu0 %v2024
    %2141 = vmatprep.subr.mxu0 0.0
    %2142 = vmatpush1.msra.mxu0 %v2023
    %2143 = vmatprep.subr.mxu0 0.0
    %2144 = vmatpush1.msra.mxu0 %v2022
    %2145 = vmatprep.subr.mxu0 0.0
    %2146 = vmatpush1.msra.mxu0 %v2021
    %2147 = vmatprep.subr.mxu0 0.0
    %2148 = vmatpush1.msra.mxu0 %v2020
    %2149 = vmatprep.subr.mxu0 0.0
    %2150 = vmatpush1.msra.mxu0 %v2019
    %2151 = vmatprep.subr.mxu0 0.0
    %2152 = vmatpush1.msra.mxu0 %v2018
    %2153 = vmatprep.subr.mxu0 0.0
    %2154 = vmatpush1.msra.mxu0 %v2017
    %2155 = vmatprep.subr.mxu0 0.0
    %2156 = vmatpush1.msra.mxu0 %v2016
    %2157 = vmatprep.subr.mxu0 0.0
    %2158 = vmatpush1.msra.mxu0 %v2015
    %2159 = vmatprep.subr.mxu0 0.0
    %2160 = vmatpush1.msra.mxu0 %v2014
    %2161 = vmatprep.subr.mxu0 0.0
    %2162 = vmatpush1.msra.mxu0 %v2013
    %2163 = vmatprep.subr.mxu0 0.0
    %2164 = vmatpush1.msra.mxu0 %v2012
    %2165 = vmatprep.subr.mxu0 0.0
    %2166 = vmatpush1.msra.mxu0 %v2011
    %2167 = vmatprep.subr.mxu0 0.0
    %2168 = vmatpush1.msra.mxu0 %v2010
    %2169 = vmatprep.subr.mxu0 0.0
    %2170 = vmatpush1.msra.mxu0 %v2009
    %2171 = vmatprep.subr.mxu0 0.0
    %2172 = vmatpush2.msra.mxu0 0.0
    %2173 = vmatprep.subr.mxu0 0.0
    %2174 = vmatpush2.msra.mxu0 0.0
    %2175 = vmatprep.subr.mxu0 0.0
    %2176 = vmatpush2.msra.mxu0 0.0
    %2177 = vmatprep.subr.mxu0 0.0
    %2178 = vmatpush2.msra.mxu0 0.0
    %2179 = vmatprep.subr.mxu0 0.0
    %2180 = vmatpush2.msra.mxu0 0.0
    %2181 = vmatprep.subr.mxu0 0.0
    %2182 = vmatpush2.msra.mxu0 0.0
    %2183 = vmatprep.subr.mxu0 0.0
    %2184 = vmatpush2.msra.mxu0 0.0
    %2185 = vmatprep.subr.mxu0 0.0
    %2186 = vmatpush2.msra.mxu0 0.0
    %2187 = vmatprep.subr.mxu0 0.0
    %2188 = vmatpush2.msra.mxu0 0.0
    %2189 = vmatprep.subr.mxu0 0.0
    %2190 = vmatpush2.msra.mxu0 0.0
    %2191 = vmatprep.subr.mxu0 0.0
    %2192 = vmatpush2.msra.mxu0 0.0
    %2193 = vmatprep.subr.mxu0 0.0
    %2194 = vmatpush2.msra.mxu0 0.0
    %2195 = vmatprep.subr.mxu0 0.0
    %2196 = vmatpush2.msra.mxu0 0.0
    %2197 = vmatprep.subr.mxu0 0.0
    %2198 = vmatpush2.msra.mxu0 0.0
    %2199 = vmatprep.subr.mxu0 0.0
    %2200 = vmatpush2.msra.mxu0 0.0
    %2201 = vmatprep.subr.mxu0 0.0
    %2202 = vmatpush2.msra.mxu0 0.0
    %2203 = vmatprep.mubr.f32.mxu0 0.0
    %2204 = vmatmul.mubr.f32.gmra.mxu0 %v1903
    %v2205 = vpop.f32.mrf.mxu0
    %v2206 = vadd.f32 %v2135, %v2205
    %v2207 = vpop.f32.mrf.mxu0
    %2208 = vmatprep.mubr.f32.mxu0 0.0
    %2209 = vmatmul.mubr.f32.gmra.mxu0 %v1904
    %v2210 = vpop.f32.mrf.mxu0
    %v2211 = vadd.f32 %v2136, %v2210
    %v2212 = vpop.f32.mrf.mxu0
    %2213 = vmatprep.mubr.f32.mxu0 0.0
    %2214 = vmatmul.mubr.f32.gmra.mxu0 %v1905
    %v2215 = vpop.f32.mrf.mxu0
    %v2216 = vadd.f32 %v2137, %v2215
    %v2217 = vpop.f32.mrf.mxu0
    %2218 = vmatprep.mubr.f32.mxu0 0.0
    %2219 = vmatmul.mubr.f32.gmra.mxu0 %v1906
    %v2220 = vpop.f32.mrf.mxu0
    %v2221 = vadd.f32 %v2138, %v2220
    %v2222 = vpop.f32.mrf.mxu0
    %2223 = vdwg.mxu0
    %v2224 = vrot.slane %v2109, 1
    %v2225 = vrot.slane %v2114, 1
    %v2226 = vrot.slane %v2119, 1
    %v2227 = vrot.slane %v2124, 1
    %v2228 = vsel %vm1174, %v2226, %v2227
    %v2229 = vsel %vm1174, %v2225, %v2226
    %v2230 = vsel %vm1174, %v2224, %v2225
    %v2231 = vsel %vm1174, %v2227, %v2224
    %v2232 = vmul.f32 %v2230, %v1182
    %v2233 = vmul.f32 %v2229, %v1187
    %v2234 = vmul.f32 %v2228, %v1192
    %v2235 = vmul.f32 %v2231, %v1197
    %v2236 = vadd.f32 %v2206, %v2232
    %v2237 = vadd.f32 %v2211, %v2233
    %v2238 = vadd.f32 %v2216, %v2234
    %v2239 = vadd.f32 %v2221, %v2235
    %v2240 = vld [vmem:[%s11] sm:$0x1]
    %v2242 = vlaneseq
    %v2243 = vshrl.u32 %v2242, 7
    %v2244 = vsub.s32 0, %v2243
    %v2245 = vrot.slane %v2240, %v2244
    %v2247 = vadd.f32 %v2236, %v2245
    %v2248 = vadd.f32 %v2237, %v2245
    %v2249 = vadd.f32 %v2238, %v2245
    %v2250 = vadd.f32 %v2239, %v2245
    %v2251 = vmax.f32 %v2247, 0.0
    %v2252 = vmax.f32 %v2248, 0.0
    %v2253 = vmax.f32 %v2249, 0.0
    %v2254 = vmax.f32 %v2250, 0.0
    %v2255 = vld [vmem:[%s3] sm:$0x3]
    %vm2256 = vcmask 261120
    %v2258 = vsel %vm2256, %v2255, 0
    %2260 = vmatprep.subr.mxu0 0.0
    %2261 = vmatpush1.msra.mxu0 0.0
    %2262 = vmatprep.subr.mxu0 0.0
    %2263 = vmatpush1.msra.mxu0 0.0
    %2264 = vmatprep.subr.mxu0 0.0
    %2265 = vmatpush1.msra.mxu0 0.0
    %2266 = vmatprep.subr.mxu0 0.0
    %2267 = vmatpush1.msra.mxu0 0.0
    %2268 = vmatprep.subr.mxu0 0.0
    %2269 = vmatpush1.msra.mxu0 0.0
    %2270 = vmatprep.subr.mxu0 0.0
    %2271 = vmatpush1.msra.mxu0 0.0
    %2272 = vmatprep.subr.mxu0 0.0
    %2273 = vmatpush1.msra.mxu0 0.0
    %2274 = vmatprep.subr.mxu0 0.0
    %2275 = vmatpush1.msra.mxu0 0.0
    %2276 = vmatprep.subr.mxu0 0.0
    %2277 = vmatpush1.msra.mxu0 0.0
    %2278 = vmatprep.subr.mxu0 0.0
    %2279 = vmatpush1.msra.mxu0 0.0
    %2280 = vmatprep.subr.mxu0 0.0
    %2281 = vmatpush1.msra.mxu0 0.0
    %2282 = vmatprep.subr.mxu0 0.0
    %2283 = vmatpush1.msra.mxu0 0.0
    %2284 = vmatprep.subr.mxu0 0.0
    %2285 = vmatpush1.msra.mxu0 %v2254
    %2286 = vmatprep.subr.mxu0 0.0
    %2287 = vmatpush1.msra.mxu0 %v2253
    %2288 = vmatprep.subr.mxu0 0.0
    %2289 = vmatpush1.msra.mxu0 %v2252
    %2290 = vmatprep.subr.mxu0 0.0
    %2291 = vmatpush1.msra.mxu0 %v2251
    %2292 = vmatprep.subr.mxu0 0.0
    %2293 = vmatpush2.msra.mxu0 0.0
    %2294 = vmatprep.subr.mxu0 0.0
    %2295 = vmatpush2.msra.mxu0 0.0
    %2296 = vmatprep.subr.mxu0 0.0
    %2297 = vmatpush2.msra.mxu0 0.0
    %2298 = vmatprep.subr.mxu0 0.0
    %2299 = vmatpush2.msra.mxu0 0.0
    %2300 = vmatprep.subr.mxu0 0.0
    %2301 = vmatpush2.msra.mxu0 0.0
    %2302 = vmatprep.subr.mxu0 0.0
    %2303 = vmatpush2.msra.mxu0 0.0
    %2304 = vmatprep.subr.mxu0 0.0
    %2305 = vmatpush2.msra.mxu0 0.0
    %2306 = vmatprep.subr.mxu0 0.0
    %2307 = vmatpush2.msra.mxu0 0.0
    %2308 = vmatprep.subr.mxu0 0.0
    %2309 = vmatpush2.msra.mxu0 0.0
    %2310 = vmatprep.subr.mxu0 0.0
    %2311 = vmatpush2.msra.mxu0 0.0
    %2312 = vmatprep.subr.mxu0 0.0
    %2313 = vmatpush2.msra.mxu0 0.0
    %2314 = vmatprep.subr.mxu0 0.0
    %2315 = vmatpush2.msra.mxu0 0.0
    %2316 = vmatprep.subr.mxu0 0.0
    %2317 = vmatpush2.msra.mxu0 0.0
    %2318 = vmatprep.subr.mxu0 0.0
    %2319 = vmatpush2.msra.mxu0 0.0
    %2320 = vmatprep.subr.mxu0 0.0
    %2321 = vmatpush2.msra.mxu0 0.0
    %2322 = vmatprep.subr.mxu0 0.0
    %2323 = vmatpush2.msra.mxu0 0.0
    %2324 = vmatprep.mubr.f32.mxu0 0.0
    %2325 = vmatmul.mubr.f32.gmra.mxu0 %v2258
    %v2326 = vpop.f32.mrf.mxu0
    %v2327 = vadd.f32 0.0, %v2326
    %v2328 = vpop.f32.mrf.mxu0
    %2329 = vdwg.mxu0
    %v2330 = vld [vmem:[%s12] sm:$0xff]
    %v2331 = vld [vmem:[%s12 + $0x8] sm:$0xff]
    %v2332 = vld [vmem:[%s12 + $0x10] sm:$0xff]
    %v2333 = vld [vmem:[%s12 + $0x18] sm:$0xff]
    %v2334 = vld [vmem:[%s12 + $0x20] sm:$0xff]
    %v2335 = vld [vmem:[%s12 + $0x28] sm:$0xff]
    %v2336 = vld [vmem:[%s12 + $0x30] sm:$0xff]
    %v2337 = vld [vmem:[%s12 + $0x38] sm:$0xff]
    %v2338 = vld [vmem:[%s12 + $0x40] sm:$0xff]
    %v2339 = vld [vmem:[%s12 + $0x48] sm:$0xff]
    %v2340 = vld [vmem:[%s12 + $0x50] sm:$0xff]
    %v2341 = vld [vmem:[%s12 + $0x58] sm:$0xff]
    %v2342 = vld [vmem:[%s12 + $0x60] sm:$0xff]
    %v2343 = vld [vmem:[%s12 + $0x68] sm:$0xff]
    %v2344 = vld [vmem:[%s12 + $0x70] sm:$0xff]
    %v2345 = vld [vmem:[%s12 + $0x78] sm:$0xff]
    %v2346 = vld [vmem:[%s13] sm:$0x1]
    %v2348 = vlaneseq
    %v2349 = vshrl.u32 %v2348, 7
    %v2350 = vsub.s32 0, %v2349
    %v2351 = vrot.slane %v2346, %v2350
    %2353 = vmatprep.subr.mxu0 0.0
    %2354 = vmatpush1.msra.mxu0 %v2345
    %2355 = vmatprep.subr.mxu0 0.0
    %2356 = vmatpush1.msra.mxu0 %v2344
    %2357 = vmatprep.subr.mxu0 0.0
    %2358 = vmatpush1.msra.mxu0 %v2343
    %2359 = vmatprep.subr.mxu0 0.0
    %2360 = vmatpush1.msra.mxu0 %v2342
    %2361 = vmatprep.subr.mxu0 0.0
    %2362 = vmatpush1.msra.mxu0 %v2341
    %2363 = vmatprep.subr.mxu0 0.0
    %2364 = vmatpush1.msra.mxu0 %v2340
    %2365 = vmatprep.subr.mxu0 0.0
    %2366 = vmatpush1.msra.mxu0 %v2339
    %2367 = vmatprep.subr.mxu0 0.0
    %2368 = vmatpush1.msra.mxu0 %v2338
    %2369 = vmatprep.subr.mxu0 0.0
    %2370 = vmatpush1.msra.mxu0 %v2337
    %2371 = vmatprep.subr.mxu0 0.0
    %2372 = vmatpush1.msra.mxu0 %v2336
    %2373 = vmatprep.subr.mxu0 0.0
    %2374 = vmatpush1.msra.mxu0 %v2335
    %2375 = vmatprep.subr.mxu0 0.0
    %2376 = vmatpush1.msra.mxu0 %v2334
    %2377 = vmatprep.subr.mxu0 0.0
    %2378 = vmatpush1.msra.mxu0 %v2333
    %2379 = vmatprep.subr.mxu0 0.0
    %2380 = vmatpush1.msra.mxu0 %v2332
    %2381 = vmatprep.subr.mxu0 0.0
    %2382 = vmatpush1.msra.mxu0 %v2331
    %2383 = vmatprep.subr.mxu0 0.0
    %2384 = vmatpush1.msra.mxu0 %v2330
    %2385 = vmatprep.subr.mxu0 0.0
    %2386 = vmatpush2.msra.mxu0 0.0
    %2387 = vmatprep.subr.mxu0 0.0
    %2388 = vmatpush2.msra.mxu0 0.0
    %2389 = vmatprep.subr.mxu0 0.0
    %2390 = vmatpush2.msra.mxu0 0.0
    %2391 = vmatprep.subr.mxu0 0.0
    %2392 = vmatpush2.msra.mxu0 0.0
    %2393 = vmatprep.subr.mxu0 0.0
    %2394 = vmatpush2.msra.mxu0 0.0
    %2395 = vmatprep.subr.mxu0 0.0
    %2396 = vmatpush2.msra.mxu0 0.0
    %2397 = vmatprep.subr.mxu0 0.0
    %2398 = vmatpush2.msra.mxu0 0.0
    %2399 = vmatprep.subr.mxu0 0.0
    %2400 = vmatpush2.msra.mxu0 0.0
    %2401 = vmatprep.subr.mxu0 0.0
    %2402 = vmatpush2.msra.mxu0 0.0
    %2403 = vmatprep.subr.mxu0 0.0
    %2404 = vmatpush2.msra.mxu0 0.0
    %2405 = vmatprep.subr.mxu0 0.0
    %2406 = vmatpush2.msra.mxu0 0.0
    %2407 = vmatprep.subr.mxu0 0.0
    %2408 = vmatpush2.msra.mxu0 0.0
    %2409 = vmatprep.subr.mxu0 0.0
    %2410 = vmatpush2.msra.mxu0 0.0
    %2411 = vmatprep.subr.mxu0 0.0
    %2412 = vmatpush2.msra.mxu0 0.0
    %2413 = vmatprep.subr.mxu0 0.0
    %2414 = vmatpush2.msra.mxu0 0.0
    %2415 = vmatprep.subr.mxu0 0.0
    %2416 = vmatpush2.msra.mxu0 0.0
    %2417 = vmatprep.mubr.f32.mxu0 0.0
    %2418 = vmatmul.mubr.f32.gmra.mxu0 %v2327
    %v2419 = vpop.f32.mrf.mxu0
    %v2420 = vadd.f32 %v2351, %v2419
    %v2421 = vpop.f32.mrf.mxu0
    %2422 = vdwg.mxu0
    %vm2423 = vcmask 58368
    %2424 = vst.msk [vmem:[#allocation2] sm:$0x3] %vm2423, %v2420
    // Predicated region
    $region58: #{video_cnn_pool_forward.1} parent=1 // pred_check
      _
    $region59: #{video_cnn_pool_forward.1} parent=1 // pred_check_branch
      %2426 = sbr.rel (0) target = $region61
    $region60: #{video_cnn_pool_forward.1} parent=1 // pred_region
      %s2428 = ssub.s32 32, 32
      %2429 = vsyncadd [#allocation3], %s2428
      %s2431 = sshll.u32 [#allocation2], 4
      %s2432 = int_to_ptr.vmem [resolvable:$true] %s2431
      %2434 = dma.vmem_to_hbm [thread:$0]  %s2432, 32, %s14, [#allocation3]
    $region61: #{video_cnn_pool_forward.1} parent=1 // pred_fallthru
      _
    // Predicated region
    $region62: #{video_cnn_pool_forward.1} parent=1 // pred_check
      _
    $region63: #{video_cnn_pool_forward.1} parent=1 // pred_check_branch
      %2436 = sbr.rel (0) target = $region65
    $region64: #{video_cnn_pool_forward.1} parent=1 // pred_region
      %2437 = dma.done [#allocation3], 32
    $region65: #{video_cnn_pool_forward.1} parent=1 // pred_fallthru
      _
    %2438 = vsyncpa [#allocation3], 1

</llo_original>
